<compile_context>
chip_gen: v7x
topology: tpu7x:2x2x1
jax: 0.10.0
libtpu: 0.0.40
codegen_flags: <defaults>
</compile_context>

<pallas_src>
import math
import functools

import jax
import jax.numpy as jnp
from jax.experimental import pallas as pl
from jax.experimental.pallas import tpu as pltpu


# ----------------------------- model config ---------------------------------
BATCH = 2
SEQ_LEN = 8
D_MODEL = 64
N_HEAD = 4
D_HEAD = D_MODEL // N_HEAD


# ------------------------------ Pallas kernel --------------------------------
def _mha_kernel(x_ref, wqkv_ref, bqkv_ref, wo_ref, bo_ref, out_ref, *, n_head):
    B, S, D = x_ref.shape
    dk = D // n_head
    scale = 1.0 / math.sqrt(dk)

    # ---- fused QKV projection: one (B*S, D) @ (D, 3D) MXU matmul ------------
    x2 = x_ref[...].reshape(B * S, D)                       # leading merge: free
    qkv = jnp.dot(x2, wqkv_ref[...],
                  preferred_element_type=jnp.float32) + bqkv_ref[...]  # (B*S, 3D)

    # ---- head-major layout (H*B, S, dk) so scores / P@V are single batched
    # dot_generals.  Built from static lane slices + a major-axis concat (data
    # movement only, no per-head matmuls).
    def head_major(base):                                   # base = 0, D, 2*D
        return jnp.concatenate(
            [qkv[:, base + h * dk: base + (h + 1) * dk].reshape(B, S, dk)
             for h in range(n_head)],
            axis=0)                                         # (H*B, S, dk), idx=h*B+b

    q = head_major(0)
    k = head_major(D)
    v = head_major(2 * D)

    # ---- scaled dot-product attention, batched over (head * batch) ----------
    scores = jnp.einsum('bqd,bkd->bqk', q, k,
                        preferred_element_type=jnp.float32) * scale    # (H*B,S,S)
    scores = scores - jnp.max(scores, axis=-1, keepdims=True)
    p = jnp.exp(scores)
    denom = jnp.sum(p, axis=-1, keepdims=True)
    p = p * pl.reciprocal(denom, approx=True)               # EUP, frees VALU slots
    ctx = jnp.einsum('bqk,bkd->bqd', p, v,
                     preferred_element_type=jnp.float32)    # (H*B, S, dk)

    # ---- merge heads back to (B*S, D) (head-contiguous cols, as in PyTorch) -
    ctx = jnp.concatenate([ctx[h * B:(h + 1) * B] for h in range(n_head)],
                          axis=-1)                          # (B, S, D)
    out = jnp.dot(ctx.reshape(B * S, D), wo_ref[...],
                  preferred_element_type=jnp.float32) + bo_ref[...]
    out_ref[...] = out.reshape(B, S, D).astype(out_ref.dtype)


def multi_head_attention_pallas(x, w_qkv, b_qkv, w_o, b_o, *, n_head):
    B, S, D = x.shape
    kernel = functools.partial(_mha_kernel, n_head=n_head)
    return pl.pallas_call(
        kernel,
        out_shape=jax.ShapeDtypeStruct((B, S, D), jnp.float32),
        in_specs=[pl.BlockSpec(memory_space=pltpu.MemorySpace.VMEM)] * 5,
        out_specs=pl.BlockSpec(memory_space=pltpu.MemorySpace.VMEM),
        # Gridless on purpose: whole working set is < 1 MiB and a grid step
        # costs ~0.35 us fixed overhead.  For large batches, grid over B with
        # dimension_semantics=("parallel",) to use both v7x TensorCores.
    )(x, w_qkv, b_qkv, w_o, b_o)


# ----------------------------- JAX reference ---------------------------------
def _mha_reference(x, w_qkv, b_qkv, w_o, b_o, *, n_head):
    B, S, D = x.shape
    dk = D // n_head
    qkv = x @ w_qkv + b_qkv[0]
    q, k, v = jnp.split(qkv, 3, axis=-1)

    def split_heads(t):
        return t.reshape(B, S, n_head, dk).transpose(0, 2, 1, 3)  # (B,H,S,dk)

    q, k, v = map(split_heads, (q, k, v))
    scores = jnp.einsum('bhqd,bhkd->bhqk', q, k) / math.sqrt(dk)
    attn = jax.nn.softmax(scores, axis=-1)
    out = jnp.einsum('bhqk,bhkd->bhqd', attn, v)
    out = out.transpose(0, 2, 1, 3).reshape(B, S, D)
    return out @ w_o + b_o[0]


# --------------------------- parameter construction --------------------------
def init_params(key):
    def lin(k, fan_in, fan_out):
        k1, k2 = jax.random.split(k)
        s = 1.0 / math.sqrt(fan_in)
        w = jax.random.uniform(k1, (fan_in, fan_out), jnp.float32, -s, s)
        b = jax.random.uniform(k2, (fan_out,), jnp.float32, -s, s)
        return w, b

    kq, kk, kv, ko = jax.random.split(key, 4)
    wq, bq = lin(kq, D_MODEL, D_MODEL)
    wk, bk = lin(kk, D_MODEL, D_MODEL)
    wv, bv = lin(kv, D_MODEL, D_MODEL)
    wo, bo = lin(ko, D_MODEL, D_MODEL)

    # fuse QKV into one lane-dense slab (columns ordered [q | k | v],
    # head-contiguous inside each block, matching the PyTorch head split)
    w_qkv = jnp.concatenate([wq, wk, wv], axis=1)        # (D, 3D)
    b_qkv = jnp.concatenate([bq, bk, bv])[None, :]       # (1, 3D)
    return w_qkv, b_qkv, wo, bo[None, :]


# ----------------------------------- main ------------------------------------
if __name__ == "__main__":
    key = jax.random.PRNGKey(0)
    kx, kp = jax.random.split(key)
    x = jax.random.normal(kx, (BATCH, SEQ_LEN, D_MODEL), jnp.float32)
    w_qkv, b_qkv, w_o, b_o = init_params(kp)

    out = multi_head_attention_pallas(x, w_qkv, b_qkv, w_o, b_o, n_head=N_HEAD)
    out = jax.block_until_ready(out)

    ref = _mha_reference(x, w_qkv, b_qkv, w_o, b_o, n_head=N_HEAD)
    assert out.shape == (BATCH, SEQ_LEN, D_MODEL)
    # tolerance slightly loosened because the kernel uses the EUP approximate
    # reciprocal for the softmax denominator
    assert jnp.allclose(out, ref, atol=2e-3, rtol=2e-3), "mismatch vs reference"

    print("KERNEL_OK")
</pallas_src>

<mosaic_0001>
module attributes {stable_mosaic.version = 11 : i64} {
  func.func @_mha_kernel(%arg0: memref<2x8x64xf32, #tpu.memory_space<vmem>>, %arg1: memref<64x192xf32, #tpu.memory_space<vmem>>, %arg2: memref<1x192xf32, #tpu.memory_space<vmem>>, %arg3: memref<64x64xf32, #tpu.memory_space<vmem>>, %arg4: memref<1x64xf32, #tpu.memory_space<vmem>>, %arg5: memref<2x8x64xf32, #tpu.memory_space<vmem>>) attributes {dimension_semantics = [], scalar_prefetch = 0 : i64, scratch_operands = 0 : i64, tpu.core_type = #tpu.core_type<tc>} {
    %c0 = arith.constant 0 : index
    %c0_0 = arith.constant 0 : index
    %c0_1 = arith.constant 0 : index
    %0 = vector.load %arg0[%c0, %c0_0, %c0_1] : memref<2x8x64xf32, #tpu.memory_space<vmem>>, vector<2x8x64xf32>
    %1 = vector.shape_cast %0 : vector<2x8x64xf32> to vector<16x64xf32>
    %c0_2 = arith.constant 0 : index
    %c0_3 = arith.constant 0 : index
    %2 = vector.load %arg1[%c0_2, %c0_3] : memref<64x192xf32, #tpu.memory_space<vmem>>, vector<64x192xf32>
    %cst = arith.constant dense<0.000000e+00> : vector<16x192xf32>
    %3 = tpu.matmul %1, %2, %cst {dimension_numbers = #tpu.dot_dimension_numbers<[1], [0], [0], [1], [0, 0, 1, 1], [], []>} : vector<16x64xf32>, vector<64x192xf32>, vector<16x192xf32> -> vector<16x192xf32>
    %c0_4 = arith.constant 0 : index
    %c0_5 = arith.constant 0 : index
    %4 = vector.load %arg2[%c0_4, %c0_5] : memref<1x192xf32, #tpu.memory_space<vmem>>, vector<1x192xf32>
    %5 = vector.broadcast %4 : vector<1x192xf32> to vector<16x192xf32>
    %6 = arith.addf %3, %5 : vector<16x192xf32>
    %7 = vector.extract_strided_slice %6 {offsets = [0, 0], sizes = [16, 16], strides = [1, 1]} : vector<16x192xf32> to vector<16x16xf32>
    %8 = vector.shape_cast %7 : vector<16x16xf32> to vector<2x8x16xf32>
    %9 = vector.extract_strided_slice %6 {offsets = [0, 16], sizes = [16, 16], strides = [1, 1]} : vector<16x192xf32> to vector<16x16xf32>
    %10 = vector.shape_cast %9 : vector<16x16xf32> to vector<2x8x16xf32>
    %11 = vector.extract_strided_slice %6 {offsets = [0, 32], sizes = [16, 16], strides = [1, 1]} : vector<16x192xf32> to vector<16x16xf32>
    %12 = vector.shape_cast %11 : vector<16x16xf32> to vector<2x8x16xf32>
    %13 = vector.extract_strided_slice %6 {offsets = [0, 48], sizes = [16, 16], strides = [1, 1]} : vector<16x192xf32> to vector<16x16xf32>
    %14 = vector.shape_cast %13 : vector<16x16xf32> to vector<2x8x16xf32>
    %15 = tpu.concatenate %8, %10, %12, %14 in 0 : vector<2x8x16xf32>, vector<2x8x16xf32>, vector<2x8x16xf32>, vector<2x8x16xf32> -> vector<8x8x16xf32>
    %16 = vector.extract_strided_slice %6 {offsets = [0, 64], sizes = [16, 16], strides = [1, 1]} : vector<16x192xf32> to vector<16x16xf32>
    %17 = vector.shape_cast %16 : vector<16x16xf32> to vector<2x8x16xf32>
    %18 = vector.extract_strided_slice %6 {offsets = [0, 80], sizes = [16, 16], strides = [1, 1]} : vector<16x192xf32> to vector<16x16xf32>
    %19 = vector.shape_cast %18 : vector<16x16xf32> to vector<2x8x16xf32>
    %20 = vector.extract_strided_slice %6 {offsets = [0, 96], sizes = [16, 16], strides = [1, 1]} : vector<16x192xf32> to vector<16x16xf32>
    %21 = vector.shape_cast %20 : vector<16x16xf32> to vector<2x8x16xf32>
    %22 = vector.extract_strided_slice %6 {offsets = [0, 112], sizes = [16, 16], strides = [1, 1]} : vector<16x192xf32> to vector<16x16xf32>
    %23 = vector.shape_cast %22 : vector<16x16xf32> to vector<2x8x16xf32>
    %24 = tpu.concatenate %17, %19, %21, %23 in 0 : vector<2x8x16xf32>, vector<2x8x16xf32>, vector<2x8x16xf32>, vector<2x8x16xf32> -> vector<8x8x16xf32>
    %25 = vector.extract_strided_slice %6 {offsets = [0, 128], sizes = [16, 16], strides = [1, 1]} : vector<16x192xf32> to vector<16x16xf32>
    %26 = vector.shape_cast %25 : vector<16x16xf32> to vector<2x8x16xf32>
    %27 = vector.extract_strided_slice %6 {offsets = [0, 144], sizes = [16, 16], strides = [1, 1]} : vector<16x192xf32> to vector<16x16xf32>
    %28 = vector.shape_cast %27 : vector<16x16xf32> to vector<2x8x16xf32>
    %29 = vector.extract_strided_slice %6 {offsets = [0, 160], sizes = [16, 16], strides = [1, 1]} : vector<16x192xf32> to vector<16x16xf32>
    %30 = vector.shape_cast %29 : vector<16x16xf32> to vector<2x8x16xf32>
    %31 = vector.extract_strided_slice %6 {offsets = [0, 176], sizes = [16, 16], strides = [1, 1]} : vector<16x192xf32> to vector<16x16xf32>
    %32 = vector.shape_cast %31 : vector<16x16xf32> to vector<2x8x16xf32>
    %33 = tpu.concatenate %26, %28, %30, %32 in 0 : vector<2x8x16xf32>, vector<2x8x16xf32>, vector<2x8x16xf32>, vector<2x8x16xf32> -> vector<8x8x16xf32>
    "tpu.trace_start"() <{level = 10 : i32, message = "bqd,bkd->bqk"}> : () -> ()
    %cst_6 = arith.constant dense<0.000000e+00> : vector<8x8x8xf32>
    %34 = tpu.matmul %15, %24, %cst_6 {dimension_numbers = #tpu.dot_dimension_numbers<[2], [2], [1], [1], [0, 0, 0, 1, 1, 1], [0], [0]>} : vector<8x8x16xf32>, vector<8x8x16xf32>, vector<8x8x8xf32> -> vector<8x8x8xf32>
    "tpu.trace_stop"() : () -> ()
    %cst_7 = arith.constant 2.500000e-01 : f32
    %35 = vector.broadcast %cst_7 : f32 to vector<8x8x8xf32>
    %36 = arith.mulf %34, %35 : vector<8x8x8xf32>
    %cst_8 = arith.constant dense<0xFF800000> : vector<8x8xf32>
    %37 = vector.multi_reduction <maximumf>, %36, %cst_8 [2] : vector<8x8x8xf32> to vector<8x8xf32>
    %38 = vector.shape_cast %37 : vector<8x8xf32> to vector<8x8x1xf32>
    %39 = vector.broadcast %38 : vector<8x8x1xf32> to vector<8x8x8xf32>
    %40 = arith.subf %36, %39 : vector<8x8x8xf32>
    %41 = math.exp %40 : vector<8x8x8xf32>
    %cst_9 = arith.constant dense<0.000000e+00> : vector<8x8xf32>
    %42 = vector.multi_reduction <add>, %41, %cst_9 [2] : vector<8x8x8xf32> to vector<8x8xf32>
    %43 = vector.shape_cast %42 : vector<8x8xf32> to vector<8x8x1xf32>
    %44 = tpu.reciprocal %43 {approx = true} : vector<8x8x1xf32> -> vector<8x8x1xf32>
    %45 = vector.broadcast %44 : vector<8x8x1xf32> to vector<8x8x8xf32>
    %46 = arith.mulf %41, %45 : vector<8x8x8xf32>
    "tpu.trace_start"() <{level = 10 : i32, message = "bqk,bkd->bqd"}> : () -> ()
    %cst_10 = arith.constant dense<0.000000e+00> : vector<8x8x16xf32>
    %47 = tpu.matmul %46, %33, %cst_10 {dimension_numbers = #tpu.dot_dimension_numbers<[2], [1], [1], [2], [0, 0, 0, 1, 1, 2], [0], [0]>} : vector<8x8x8xf32>, vector<8x8x16xf32>, vector<8x8x16xf32> -> vector<8x8x16xf32>
    "tpu.trace_stop"() : () -> ()
    %48 = vector.extract_strided_slice %47 {offsets = [0, 0, 0], sizes = [2, 8, 16], strides = [1, 1, 1]} : vector<8x8x16xf32> to vector<2x8x16xf32>
    %49 = vector.extract_strided_slice %47 {offsets = [2, 0, 0], sizes = [2, 8, 16], strides = [1, 1, 1]} : vector<8x8x16xf32> to vector<2x8x16xf32>
    %50 = vector.extract_strided_slice %47 {offsets = [4, 0, 0], sizes = [2, 8, 16], strides = [1, 1, 1]} : vector<8x8x16xf32> to vector<2x8x16xf32>
    %51 = vector.extract_strided_slice %47 {offsets = [6, 0, 0], sizes = [2, 8, 16], strides = [1, 1, 1]} : vector<8x8x16xf32> to vector<2x8x16xf32>
    %52 = tpu.concatenate %48, %49, %50, %51 in 2 : vector<2x8x16xf32>, vector<2x8x16xf32>, vector<2x8x16xf32>, vector<2x8x16xf32> -> vector<2x8x64xf32>
    %53 = vector.shape_cast %52 : vector<2x8x64xf32> to vector<16x64xf32>
    %c0_11 = arith.constant 0 : index
    %c0_12 = arith.constant 0 : index
    %54 = vector.load %arg3[%c0_11, %c0_12] : memref<64x64xf32, #tpu.memory_space<vmem>>, vector<64x64xf32>
    %cst_13 = arith.constant dense<0.000000e+00> : vector<16x64xf32>
    %55 = tpu.matmul %53, %54, %cst_13 {dimension_numbers = #tpu.dot_dimension_numbers<[1], [0], [0], [1], [0, 0, 1, 1], [], []>} : vector<16x64xf32>, vector<64x64xf32>, vector<16x64xf32> -> vector<16x64xf32>
    %c0_14 = arith.constant 0 : index
    %c0_15 = arith.constant 0 : index
    %56 = vector.load %arg4[%c0_14, %c0_15] : memref<1x64xf32, #tpu.memory_space<vmem>>, vector<1x64xf32>
    %57 = vector.broadcast %56 : vector<1x64xf32> to vector<16x64xf32>
    %58 = arith.addf %55, %57 : vector<16x64xf32>
    %59 = vector.shape_cast %58 : vector<16x64xf32> to vector<2x8x64xf32>
    %c0_16 = arith.constant 0 : index
    %c0_17 = arith.constant 0 : index
    %c0_18 = arith.constant 0 : index
    %60 = vector.load %arg5[%c0_16, %c0_17, %c0_18] : memref<2x8x64xf32, #tpu.memory_space<vmem>>, vector<2x8x64xf32>
    tpu.vector_store %arg5[%c0_16, %c0_17, %c0_18], %59 {strides = array<i32>} : memref<2x8x64xf32, #tpu.memory_space<vmem>>, vector<2x8x64xf32>,
    return
  }
}

</mosaic_0001>

<llo_original>
// kernel: tpu_custom_call.1
$region0: #{tpu_custom_call.1}
  #allocation0 [shape = 'u32[]', space=smem, size = 0x4, offset = 0x4, fixed_abs, tag = 'smem constant byte address 0x4 - core index']
  #allocation1 [shape = 'u32[144,128]{1,0:T(1,128)}', space=vmem, size = 0x12000, scoped, tag = 'internal scratch']
  %s0 = inlined_call_operand.hbm [shape: f32[2,8,64], index: 0, kind: input, shape index: {}]
  %s1 = inlined_call_operand.hbm [shape: f32[64,192], index: 1, kind: input, shape index: {}]
  %s2 = inlined_call_operand.vmem [shape: f32[1,192], index: 2, kind: input, shape index: {}]
  %s3 = inlined_call_operand.hbm [shape: f32[64,64], index: 3, kind: input, shape index: {}]
  %s4 = inlined_call_operand.vmem [shape: f32[1,64], index: 4, kind: input, shape index: {}]
  %s5 = inlined_call_operand.hbm [shape: f32[2,8,64], index: 5, kind: output, shape index: {}]
  %s6 = sld [smem:[#allocation0]]
  $region42: #{tpu_custom_call.1} parent=0
    _
  %s8 = ssub.s32 1, %s6
  %s9 = scalar_select 0, %s8, %s6
  $region1: #{tpu_custom_call.1} parent=0
    #allocation2 [shape = 'u8[8192]{0}', space=vmem, size = 0x2000, scoped, tag = 'input window, operand 0, single buffered']
    #allocation3 [shape = 's32[1]{0}', space=sflag, size = 0x4, scoped, tag = 'scoped memory for tpu_custom_call.1']
    #allocation4 [shape = 's32[1]{0}', space=sflag, size = 0x4, scoped, tag = 'scoped memory for tpu_custom_call.1']
    #allocation5 [shape = 'u8[65536]{0}', space=vmem, size = 0x10000, scoped, tag = 'input window, operand 1, single buffered']
    #allocation6 [shape = 's32[1]{0}', space=sflag, size = 0x4, scoped, tag = 'scoped memory for tpu_custom_call.1']
    #allocation7 [shape = 'u8[32768]{0}', space=vmem, size = 0x8000, scoped, tag = 'input window, operand 3, single buffered']
    #allocation8 [shape = 'u8[8192]{0}', space=vmem, size = 0x2000, scoped, tag = 'output window, operand 0, single buffered']
    %10 = vsyncpa [#allocation3], 0
    %11 = vsyncpa [#allocation6], 0
    %12 = vsyncpa [#allocation4], 0
    // Predicated region
    $region2: #{tpu_custom_call.1} parent=1 // pred_check
      _
    $region3: #{tpu_custom_call.1} parent=1 // pred_check_branch
      %14 = sbr.rel (0) target = $region5
    $region4: #{tpu_custom_call.1} parent=1 // pred_region
      %s16 = ssub.s32 256, 256
      %17 = vsyncadd [#allocation3], %s16
      %s18 = sshll.u32 [#allocation2], 4
      %s19 = int_to_ptr.vmem [resolvable:$true] %s18
      %24 = dma.hbm_to_vmem [thread:$0]  %s0, 256, %s19, [#allocation3], 128, 128, 8
    $region5: #{tpu_custom_call.1} parent=1 // pred_fallthru
      _
    // Predicated region
    $region6: #{tpu_custom_call.1} parent=1 // pred_check
      _
    $region7: #{tpu_custom_call.1} parent=1 // pred_check_branch
      %26 = sbr.rel (0) target = $region9
    $region8: #{tpu_custom_call.1} parent=1 // pred_region
      %s28 = ssub.s32 2048, 2048
      %29 = vsyncadd [#allocation6], %s28
      %s30 = sshll.u32 [#allocation5], 4
      %s31 = int_to_ptr.vmem [resolvable:$true] %s30
      %36 = dma.hbm_to_vmem [thread:$0]  %s1, 2048, %s31, [#allocation6], 256, 256, 16
    $region9: #{tpu_custom_call.1} parent=1 // pred_fallthru
      _
    // Predicated region
    $region10: #{tpu_custom_call.1} parent=1 // pred_check
      _
    $region11: #{tpu_custom_call.1} parent=1 // pred_check_branch
      %38 = sbr.rel (0) target = $region13
    $region12: #{tpu_custom_call.1} parent=1 // pred_region
      _
    $region13: #{tpu_custom_call.1} parent=1 // pred_fallthru
      _
    // Predicated region
    $region14: #{tpu_custom_call.1} parent=1 // pred_check
      _
    $region15: #{tpu_custom_call.1} parent=1 // pred_check_branch
      %40 = sbr.rel (0) target = $region17
    $region16: #{tpu_custom_call.1} parent=1 // pred_region
      %s42 = ssub.s32 1024, 1024
      %43 = vsyncadd [#allocation6], %s42
      %s44 = sshll.u32 [#allocation7], 4
      %s45 = int_to_ptr.vmem [resolvable:$true] %s44
      %50 = dma.hbm_to_vmem [thread:$0]  %s3, 1024, %s45, [#allocation6], 128, 128, 8
    $region17: #{tpu_custom_call.1} parent=1 // pred_fallthru
      _
    // Predicated region
    $region18: #{tpu_custom_call.1} parent=1 // pred_check
      _
    $region19: #{tpu_custom_call.1} parent=1 // pred_check_branch
      %52 = sbr.rel (0) target = $region21
    $region20: #{tpu_custom_call.1} parent=1 // pred_region
      _
    $region21: #{tpu_custom_call.1} parent=1 // pred_fallthru
      _
    // Predicated region
    $region22: #{tpu_custom_call.1} parent=1 // pred_check
      _
    $region23: #{tpu_custom_call.1} parent=1 // pred_check_branch
      %54 = sbr.rel (0) target = $region25
    $region24: #{tpu_custom_call.1} parent=1 // pred_region
      %55 = dma.done [#allocation3], 256
    $region25: #{tpu_custom_call.1} parent=1 // pred_fallthru
      _
    // Predicated region
    $region26: #{tpu_custom_call.1} parent=1 // pred_check
      _
    $region27: #{tpu_custom_call.1} parent=1 // pred_check_branch
      %57 = sbr.rel (0) target = $region29
    $region28: #{tpu_custom_call.1} parent=1 // pred_region
      %58 = dma.done [#allocation6], 2048
    $region29: #{tpu_custom_call.1} parent=1 // pred_fallthru
      _
    // Predicated region
    $region30: #{tpu_custom_call.1} parent=1 // pred_check
      _
    $region31: #{tpu_custom_call.1} parent=1 // pred_check_branch
      %60 = sbr.rel (0) target = $region33
    $region32: #{tpu_custom_call.1} parent=1 // pred_region
      %61 = dma.done [#allocation6], 1024
    $region33: #{tpu_custom_call.1} parent=1 // pred_fallthru
      _
    %v62 = vld [vmem:[#allocation2] sm:$0xff]
    %v63 = vld [vmem:[#allocation2 + $0x8] sm:$0xff]
    %v64 = vld [vmem:[#allocation5] sm:$0xff]
    %v65 = vld [vmem:[#allocation5 + $0x8] sm:$0xff]
    %v66 = vld [vmem:[#allocation5 + $0x10] sm:$0xff]
    %v67 = vld [vmem:[#allocation5 + $0x18] sm:$0xff]
    %v68 = vld [vmem:[#allocation5 + $0x20] sm:$0xff]
    %v69 = vld [vmem:[#allocation5 + $0x28] sm:$0xff]
    %v70 = vld [vmem:[#allocation5 + $0x30] sm:$0xff]
    %v71 = vld [vmem:[#allocation5 + $0x38] sm:$0xff]
    %v72 = vld [vmem:[#allocation5 + $0x40] sm:$0xff]
    %v73 = vld [vmem:[#allocation5 + $0x48] sm:$0xff]
    %v74 = vld [vmem:[#allocation5 + $0x50] sm:$0xff]
    %v75 = vld [vmem:[#allocation5 + $0x58] sm:$0xff]
    %v76 = vld [vmem:[#allocation5 + $0x60] sm:$0xff]
    %v77 = vld [vmem:[#allocation5 + $0x68] sm:$0xff]
    %v78 = vld [vmem:[#allocation5 + $0x70] sm:$0xff]
    %v79 = vld [vmem:[#allocation5 + $0x78] sm:$0xff]
    %v80 = vld [vmem:[%s2] sm:$0x3]
    %v82 = vlaneseq
    %v83 = vshrl.u32 %v82, 7
    %v84 = vsub.s32 0, %v83
    %v85 = vrot.slane %v80, %v84
    %v86 = vlaneseq
    %v87 = vshrl.u32 %v86, 7
    %v88 = vsub.s32 1, %v87
    %v89 = vrot.slane %v80, %v88
    %vm92 = vcmask 523264
    %v94 = vsel %vm92, %v62, 0
    %v97 = vsel %vm92, %v63, 0
    %99 = vmatprep.subr.mxu0 %v65
    %100 = vmatpush1.msra.mxu0 %v64
    %101 = vmatprep.subr.mxu0 %v67
    %102 = vmatpush1.msra.mxu0 %v66
    %103 = vmatprep.subr.mxu0 %v69
    %104 = vmatpush1.msra.mxu0 %v68
    %105 = vmatprep.subr.mxu0 %v71
    %106 = vmatpush1.msra.mxu0 %v70
    %107 = vmatprep.subr.mxu0 %v73
    %108 = vmatpush1.msra.mxu0 %v72
    %109 = vmatprep.subr.mxu0 %v75
    %110 = vmatpush1.msra.mxu0 %v74
    %111 = vmatprep.subr.mxu0 %v77
    %112 = vmatpush1.msra.mxu0 %v76
    %113 = vmatprep.subr.mxu0 %v79
    %114 = vmatpush1.msra.mxu0 %v78
    %115 = vmatprep.subr.mxu0 0.0
    %116 = vmatpush1.msra.mxu0 0.0
    %117 = vmatprep.subr.mxu0 0.0
    %118 = vmatpush1.msra.mxu0 0.0
    %119 = vmatprep.subr.mxu0 0.0
    %120 = vmatpush1.msra.mxu0 0.0
    %121 = vmatprep.subr.mxu0 0.0
    %122 = vmatpush1.msra.mxu0 0.0
    %123 = vmatprep.subr.mxu0 0.0
    %124 = vmatpush1.msra.mxu0 0.0
    %125 = vmatprep.subr.mxu0 0.0
    %126 = vmatpush1.msra.mxu0 0.0
    %127 = vmatprep.subr.mxu0 0.0
    %128 = vmatpush1.msra.mxu0 0.0
    %129 = vmatprep.subr.mxu0 0.0
    %130 = vmatpush1.msra.mxu0 0.0
    %131 = vmatprep.subr.mxu0 0.0
    %132 = vmatpush1.msra.mxu0 0.0
    %133 = vmatprep.subr.mxu0 0.0
    %134 = vmatpush1.msra.mxu0 0.0
    %135 = vmatprep.subr.mxu0 0.0
    %136 = vmatpush1.msra.mxu0 0.0
    %137 = vmatprep.subr.mxu0 0.0
    %138 = vmatpush1.msra.mxu0 0.0
    %139 = vmatprep.subr.mxu0 0.0
    %140 = vmatpush1.msra.mxu0 0.0
    %141 = vmatprep.subr.mxu0 0.0
    %142 = vmatpush1.msra.mxu0 0.0
    %143 = vmatprep.subr.mxu0 0.0
    %144 = vmatpush1.msra.mxu0 0.0
    %145 = vmatprep.subr.mxu0 0.0
    %146 = vmatpush1.msra.mxu0 0.0
    %147 = vmatprep.subr.mxu0 0.0
    %148 = vmatpush1.msra.mxu0 0.0
    %149 = vmatprep.subr.mxu0 0.0
    %150 = vmatpush1.msra.mxu0 0.0
    %151 = vmatprep.subr.mxu0 0.0
    %152 = vmatpush1.msra.mxu0 0.0
    %153 = vmatprep.subr.mxu0 0.0
    %154 = vmatpush1.msra.mxu0 0.0
    %155 = vmatprep.subr.mxu0 0.0
    %156 = vmatpush1.msra.mxu0 0.0
    %157 = vmatprep.subr.mxu0 0.0
    %158 = vmatpush1.msra.mxu0 0.0
    %159 = vmatprep.subr.mxu0 0.0
    %160 = vmatpush1.msra.mxu0 0.0
    %161 = vmatprep.subr.mxu0 0.0
    %162 = vmatpush1.msra.mxu0 0.0
    %163 = vmatprep.mubr.f32.mxu0 0.0
    %164 = vmatmul.mubr.f32.gmra.mrb[0].mxu0 %v94
    %v165 = vpop.f32.mrb[0].mxu0
    %v166 = vadd.f32 %v85, %v165
    %v167 = vpop.f32.mrb[0].mxu0
    %v168 = vadd.f32 %v89, %v167
    %169 = vmatprep.mubr.f32.mxu0 0.0
    %170 = vmatmul.mubr.f32.gmra.mrb[0].mxu0 %v97
    %v171 = vpop.f32.mrb[0].mxu0
    %v172 = vadd.f32 %v85, %v171
    %v173 = vpop.f32.mrb[0].mxu0
    %v174 = vadd.f32 %v89, %v173
    %175 = vdwg.mxu0
    %178 = vrot.lane.b32.xlu0 %v166, 112
    %v179 = vpop.permute.xlu0 %178
    %180 = vrot.lane.b32.xlu0 %v172, 112
    %v181 = vpop.permute.xlu0 %180
    %182 = vrot.lane.b32.xlu0 %v166, 96
    %v183 = vpop.permute.xlu0 %182
    %184 = vrot.lane.b32.xlu0 %v172, 96
    %v185 = vpop.permute.xlu0 %184
    %186 = vrot.lane.b32.xlu0 %v166, 80
    %v187 = vpop.permute.xlu0 %186
    %188 = vrot.lane.b32.xlu0 %v172, 80
    %v189 = vpop.permute.xlu0 %188
    %192 = vrot.lane.b32.xlu0 %v168, 112
    %v193 = vpop.permute.xlu0 %192
    %194 = vrot.lane.b32.xlu0 %v174, 112
    %v195 = vpop.permute.xlu0 %194
    %198 = vrot.lane.b32.xlu0 %v168, 96
    %v199 = vpop.permute.xlu0 %198
    %200 = vrot.lane.b32.xlu0 %v174, 96
    %v201 = vpop.permute.xlu0 %200
    %204 = vrot.lane.b32.xlu0 %v168, 80
    %v205 = vpop.permute.xlu0 %204
    %206 = vrot.lane.b32.xlu0 %v174, 80
    %v207 = vpop.permute.xlu0 %206
    %210 = vrot.lane.b32.xlu0 %v166, 64
    %v211 = vpop.permute.xlu0 %210
    %vm212 = vcmask 130048
    %v213 = vsel %vm212, %v166, 0
    %v215 = vsel %vm212, %v211, 0
    %217 = vmatprep.subr.mxu0 0.0
    %218 = vmatpush1.xpose.msra.mxu0 %v215
    %219 = vmatprep.subr.mxu0 0.0
    %220 = vmatpush1.xpose.msra.mxu0 0.0
    %221 = vmatprep.subr.mxu0 0.0
    %222 = vmatpush1.xpose.msra.mxu0 0.0
    %223 = vmatprep.subr.mxu0 0.0
    %224 = vmatpush1.xpose.msra.mxu0 0.0
    %225 = vmatprep.subr.mxu0 0.0
    %226 = vmatpush1.xpose.msra.mxu0 0.0
    %227 = vmatprep.subr.mxu0 0.0
    %228 = vmatpush1.xpose.msra.mxu0 0.0
    %229 = vmatprep.subr.mxu0 0.0
    %230 = vmatpush1.xpose.msra.mxu0 0.0
    %231 = vmatprep.subr.mxu0 0.0
    %232 = vmatpush1.xpose.msra.mxu0 0.0
    %233 = vmatprep.subr.mxu0 0.0
    %234 = vmatpush1.xpose.msra.mxu0 0.0
    %235 = vmatprep.subr.mxu0 0.0
    %236 = vmatpush1.xpose.msra.mxu0 0.0
    %237 = vmatprep.subr.mxu0 0.0
    %238 = vmatpush1.xpose.msra.mxu0 0.0
    %239 = vmatprep.subr.mxu0 0.0
    %240 = vmatpush1.xpose.msra.mxu0 0.0
    %241 = vmatprep.subr.mxu0 0.0
    %242 = vmatpush1.xpose.msra.mxu0 0.0
    %243 = vmatprep.subr.mxu0 0.0
    %244 = vmatpush1.xpose.msra.mxu0 0.0
    %245 = vmatprep.subr.mxu0 0.0
    %246 = vmatpush1.xpose.msra.mxu0 0.0
    %247 = vmatprep.subr.mxu0 0.0
    %248 = vmatpush1.xpose.msra.mxu0 0.0
    %249 = vmatprep.subr.mxu0 0.0
    %250 = vmatpush1.xpose.msra.mxu0 0.0
    %251 = vmatprep.subr.mxu0 0.0
    %252 = vmatpush1.xpose.msra.mxu0 0.0
    %253 = vmatprep.subr.mxu0 0.0
    %254 = vmatpush1.xpose.msra.mxu0 0.0
    %255 = vmatprep.subr.mxu0 0.0
    %256 = vmatpush1.xpose.msra.mxu0 0.0
    %257 = vmatprep.subr.mxu0 0.0
    %258 = vmatpush1.xpose.msra.mxu0 0.0
    %259 = vmatprep.subr.mxu0 0.0
    %260 = vmatpush1.xpose.msra.mxu0 0.0
    %261 = vmatprep.subr.mxu0 0.0
    %262 = vmatpush1.xpose.msra.mxu0 0.0
    %263 = vmatprep.subr.mxu0 0.0
    %264 = vmatpush1.xpose.msra.mxu0 0.0
    %265 = vmatprep.subr.mxu0 0.0
    %266 = vmatpush1.xpose.msra.mxu0 0.0
    %267 = vmatprep.subr.mxu0 0.0
    %268 = vmatpush1.xpose.msra.mxu0 0.0
    %269 = vmatprep.subr.mxu0 0.0
    %270 = vmatpush1.xpose.msra.mxu0 0.0
    %271 = vmatprep.subr.mxu0 0.0
    %272 = vmatpush1.xpose.msra.mxu0 0.0
    %273 = vmatprep.subr.mxu0 0.0
    %274 = vmatpush1.xpose.msra.mxu0 0.0
    %275 = vmatprep.subr.mxu0 0.0
    %276 = vmatpush1.xpose.msra.mxu0 0.0
    %277 = vmatprep.subr.mxu0 0.0
    %278 = vmatpush1.xpose.msra.mxu0 0.0
    %279 = vmatprep.subr.mxu0 0.0
    %280 = vmatpush1.xpose.msra.mxu0 0.0
    %281 = vmatprep.mubr.f32.mxu0 0.0
    %282 = vmatmul.mubr.f32.gmra.mrb[0].mxu0 %v213
    %v283 = vpop.f32.mrb[0].mxu0
    %v284 = vadd.f32 0.0, %v283
    %v285 = vpop.f32.mrb[0].mxu0
    %286 = vdwg.mxu0
    %287 = vrot.lane.b32.xlu0 %v172, 64
    %v288 = vpop.permute.xlu0 %287
    %v289 = vsel %vm212, %v172, 0
    %v291 = vsel %vm212, %v288, 0
    %293 = vmatprep.subr.mxu0 0.0
    %294 = vmatpush1.xpose.msra.mxu0 %v291
    %295 = vmatprep.subr.mxu0 0.0
    %296 = vmatpush1.xpose.msra.mxu0 0.0
    %297 = vmatprep.subr.mxu0 0.0
    %298 = vmatpush1.xpose.msra.mxu0 0.0
    %299 = vmatprep.subr.mxu0 0.0
    %300 = vmatpush1.xpose.msra.mxu0 0.0
    %301 = vmatprep.subr.mxu0 0.0
    %302 = vmatpush1.xpose.msra.mxu0 0.0
    %303 = vmatprep.subr.mxu0 0.0
    %304 = vmatpush1.xpose.msra.mxu0 0.0
    %305 = vmatprep.subr.mxu0 0.0
    %306 = vmatpush1.xpose.msra.mxu0 0.0
    %307 = vmatprep.subr.mxu0 0.0
    %308 = vmatpush1.xpose.msra.mxu0 0.0
    %309 = vmatprep.subr.mxu0 0.0
    %310 = vmatpush1.xpose.msra.mxu0 0.0
    %311 = vmatprep.subr.mxu0 0.0
    %312 = vmatpush1.xpose.msra.mxu0 0.0
    %313 = vmatprep.subr.mxu0 0.0
    %314 = vmatpush1.xpose.msra.mxu0 0.0
    %315 = vmatprep.subr.mxu0 0.0
    %316 = vmatpush1.xpose.msra.mxu0 0.0
    %317 = vmatprep.subr.mxu0 0.0
    %318 = vmatpush1.xpose.msra.mxu0 0.0
    %319 = vmatprep.subr.mxu0 0.0
    %320 = vmatpush1.xpose.msra.mxu0 0.0
    %321 = vmatprep.subr.mxu0 0.0
    %322 = vmatpush1.xpose.msra.mxu0 0.0
    %323 = vmatprep.subr.mxu0 0.0
    %324 = vmatpush1.xpose.msra.mxu0 0.0
    %325 = vmatprep.subr.mxu0 0.0
    %326 = vmatpush1.xpose.msra.mxu0 0.0
    %327 = vmatprep.subr.mxu0 0.0
    %328 = vmatpush1.xpose.msra.mxu0 0.0
    %329 = vmatprep.subr.mxu0 0.0
    %330 = vmatpush1.xpose.msra.mxu0 0.0
    %331 = vmatprep.subr.mxu0 0.0
    %332 = vmatpush1.xpose.msra.mxu0 0.0
    %333 = vmatprep.subr.mxu0 0.0
    %334 = vmatpush1.xpose.msra.mxu0 0.0
    %335 = vmatprep.subr.mxu0 0.0
    %336 = vmatpush1.xpose.msra.mxu0 0.0
    %337 = vmatprep.subr.mxu0 0.0
    %338 = vmatpush1.xpose.msra.mxu0 0.0
    %339 = vmatprep.subr.mxu0 0.0
    %340 = vmatpush1.xpose.msra.mxu0 0.0
    %341 = vmatprep.subr.mxu0 0.0
    %342 = vmatpush1.xpose.msra.mxu0 0.0
    %343 = vmatprep.subr.mxu0 0.0
    %344 = vmatpush1.xpose.msra.mxu0 0.0
    %345 = vmatprep.subr.mxu0 0.0
    %346 = vmatpush1.xpose.msra.mxu0 0.0
    %347 = vmatprep.subr.mxu0 0.0
    %348 = vmatpush1.xpose.msra.mxu0 0.0
    %349 = vmatprep.subr.mxu0 0.0
    %350 = vmatpush1.xpose.msra.mxu0 0.0
    %351 = vmatprep.subr.mxu0 0.0
    %352 = vmatpush1.xpose.msra.mxu0 0.0
    %353 = vmatprep.subr.mxu0 0.0
    %354 = vmatpush1.xpose.msra.mxu0 0.0
    %355 = vmatprep.subr.mxu0 0.0
    %356 = vmatpush1.xpose.msra.mxu0 0.0
    %357 = vmatprep.mubr.f32.mxu0 0.0
    %358 = vmatmul.mubr.f32.gmra.mrb[0].mxu0 %v289
    %v359 = vpop.f32.mrb[0].mxu0
    %v360 = vadd.f32 0.0, %v359
    %v361 = vpop.f32.mrb[0].mxu0
    %362 = vdwg.mxu0
    %363 = vrot.lane.b32.xlu0 %v179, 64
    %v364 = vpop.permute.xlu0 %363
    %v365 = vsel %vm212, %v179, 0
    %v367 = vsel %vm212, %v364, 0
    %369 = vmatprep.subr.mxu0 0.0
    %370 = vmatpush1.xpose.msra.mxu0 %v367
    %371 = vmatprep.subr.mxu0 0.0
    %372 = vmatpush1.xpose.msra.mxu0 0.0
    %373 = vmatprep.subr.mxu0 0.0
    %374 = vmatpush1.xpose.msra.mxu0 0.0
    %375 = vmatprep.subr.mxu0 0.0
    %376 = vmatpush1.xpose.msra.mxu0 0.0
    %377 = vmatprep.subr.mxu0 0.0
    %378 = vmatpush1.xpose.msra.mxu0 0.0
    %379 = vmatprep.subr.mxu0 0.0
    %380 = vmatpush1.xpose.msra.mxu0 0.0
    %381 = vmatprep.subr.mxu0 0.0
    %382 = vmatpush1.xpose.msra.mxu0 0.0
    %383 = vmatprep.subr.mxu0 0.0
    %384 = vmatpush1.xpose.msra.mxu0 0.0
    %385 = vmatprep.subr.mxu0 0.0
    %386 = vmatpush1.xpose.msra.mxu0 0.0
    %387 = vmatprep.subr.mxu0 0.0
    %388 = vmatpush1.xpose.msra.mxu0 0.0
    %389 = vmatprep.subr.mxu0 0.0
    %390 = vmatpush1.xpose.msra.mxu0 0.0
    %391 = vmatprep.subr.mxu0 0.0
    %392 = vmatpush1.xpose.msra.mxu0 0.0
    %393 = vmatprep.subr.mxu0 0.0
    %394 = vmatpush1.xpose.msra.mxu0 0.0
    %395 = vmatprep.subr.mxu0 0.0
    %396 = vmatpush1.xpose.msra.mxu0 0.0
    %397 = vmatprep.subr.mxu0 0.0
    %398 = vmatpush1.xpose.msra.mxu0 0.0
    %399 = vmatprep.subr.mxu0 0.0
    %400 = vmatpush1.xpose.msra.mxu0 0.0
    %401 = vmatprep.subr.mxu0 0.0
    %402 = vmatpush1.xpose.msra.mxu0 0.0
    %403 = vmatprep.subr.mxu0 0.0
    %404 = vmatpush1.xpose.msra.mxu0 0.0
    %405 = vmatprep.subr.mxu0 0.0
    %406 = vmatpush1.xpose.msra.mxu0 0.0
    %407 = vmatprep.subr.mxu0 0.0
    %408 = vmatpush1.xpose.msra.mxu0 0.0
    %409 = vmatprep.subr.mxu0 0.0
    %410 = vmatpush1.xpose.msra.mxu0 0.0
    %411 = vmatprep.subr.mxu0 0.0
    %412 = vmatpush1.xpose.msra.mxu0 0.0
    %413 = vmatprep.subr.mxu0 0.0
    %414 = vmatpush1.xpose.msra.mxu0 0.0
    %415 = vmatprep.subr.mxu0 0.0
    %416 = vmatpush1.xpose.msra.mxu0 0.0
    %417 = vmatprep.subr.mxu0 0.0
    %418 = vmatpush1.xpose.msra.mxu0 0.0
    %419 = vmatprep.subr.mxu0 0.0
    %420 = vmatpush1.xpose.msra.mxu0 0.0
    %421 = vmatprep.subr.mxu0 0.0
    %422 = vmatpush1.xpose.msra.mxu0 0.0
    %423 = vmatprep.subr.mxu0 0.0
    %424 = vmatpush1.xpose.msra.mxu0 0.0
    %425 = vmatprep.subr.mxu0 0.0
    %426 = vmatpush1.xpose.msra.mxu0 0.0
    %427 = vmatprep.subr.mxu0 0.0
    %428 = vmatpush1.xpose.msra.mxu0 0.0
    %429 = vmatprep.subr.mxu0 0.0
    %430 = vmatpush1.xpose.msra.mxu0 0.0
    %431 = vmatprep.subr.mxu0 0.0
    %432 = vmatpush1.xpose.msra.mxu0 0.0
    %433 = vmatprep.mubr.f32.mxu0 0.0
    %434 = vmatmul.mubr.f32.gmra.mrb[0].mxu0 %v365
    %v435 = vpop.f32.mrb[0].mxu0
    %v436 = vadd.f32 0.0, %v435
    %v437 = vpop.f32.mrb[0].mxu0
    %438 = vdwg.mxu0
    %439 = vrot.lane.b32.xlu0 %v181, 64
    %v440 = vpop.permute.xlu0 %439
    %v441 = vsel %vm212, %v181, 0
    %v443 = vsel %vm212, %v440, 0
    %445 = vmatprep.subr.mxu0 0.0
    %446 = vmatpush1.xpose.msra.mxu0 %v443
    %447 = vmatprep.subr.mxu0 0.0
    %448 = vmatpush1.xpose.msra.mxu0 0.0
    %449 = vmatprep.subr.mxu0 0.0
    %450 = vmatpush1.xpose.msra.mxu0 0.0
    %451 = vmatprep.subr.mxu0 0.0
    %452 = vmatpush1.xpose.msra.mxu0 0.0
    %453 = vmatprep.subr.mxu0 0.0
    %454 = vmatpush1.xpose.msra.mxu0 0.0
    %455 = vmatprep.subr.mxu0 0.0
    %456 = vmatpush1.xpose.msra.mxu0 0.0
    %457 = vmatprep.subr.mxu0 0.0
    %458 = vmatpush1.xpose.msra.mxu0 0.0
    %459 = vmatprep.subr.mxu0 0.0
    %460 = vmatpush1.xpose.msra.mxu0 0.0
    %461 = vmatprep.subr.mxu0 0.0
    %462 = vmatpush1.xpose.msra.mxu0 0.0
    %463 = vmatprep.subr.mxu0 0.0
    %464 = vmatpush1.xpose.msra.mxu0 0.0
    %465 = vmatprep.subr.mxu0 0.0
    %466 = vmatpush1.xpose.msra.mxu0 0.0
    %467 = vmatprep.subr.mxu0 0.0
    %468 = vmatpush1.xpose.msra.mxu0 0.0
    %469 = vmatprep.subr.mxu0 0.0
    %470 = vmatpush1.xpose.msra.mxu0 0.0
    %471 = vmatprep.subr.mxu0 0.0
    %472 = vmatpush1.xpose.msra.mxu0 0.0
    %473 = vmatprep.subr.mxu0 0.0
    %474 = vmatpush1.xpose.msra.mxu0 0.0
    %475 = vmatprep.subr.mxu0 0.0
    %476 = vmatpush1.xpose.msra.mxu0 0.0
    %477 = vmatprep.subr.mxu0 0.0
    %478 = vmatpush1.xpose.msra.mxu0 0.0
    %479 = vmatprep.subr.mxu0 0.0
    %480 = vmatpush1.xpose.msra.mxu0 0.0
    %481 = vmatprep.subr.mxu0 0.0
    %482 = vmatpush1.xpose.msra.mxu0 0.0
    %483 = vmatprep.subr.mxu0 0.0
    %484 = vmatpush1.xpose.msra.mxu0 0.0
    %485 = vmatprep.subr.mxu0 0.0
    %486 = vmatpush1.xpose.msra.mxu0 0.0
    %487 = vmatprep.subr.mxu0 0.0
    %488 = vmatpush1.xpose.msra.mxu0 0.0
    %489 = vmatprep.subr.mxu0 0.0
    %490 = vmatpush1.xpose.msra.mxu0 0.0
    %491 = vmatprep.subr.mxu0 0.0
    %492 = vmatpush1.xpose.msra.mxu0 0.0
    %493 = vmatprep.subr.mxu0 0.0
    %494 = vmatpush1.xpose.msra.mxu0 0.0
    %495 = vmatprep.subr.mxu0 0.0
    %496 = vmatpush1.xpose.msra.mxu0 0.0
    %497 = vmatprep.subr.mxu0 0.0
    %498 = vmatpush1.xpose.msra.mxu0 0.0
    %499 = vmatprep.subr.mxu0 0.0
    %500 = vmatpush1.xpose.msra.mxu0 0.0
    %501 = vmatprep.subr.mxu0 0.0
    %502 = vmatpush1.xpose.msra.mxu0 0.0
    %503 = vmatprep.subr.mxu0 0.0
    %504 = vmatpush1.xpose.msra.mxu0 0.0
    %505 = vmatprep.subr.mxu0 0.0
    %506 = vmatpush1.xpose.msra.mxu0 0.0
    %507 = vmatprep.subr.mxu0 0.0
    %508 = vmatpush1.xpose.msra.mxu0 0.0
    %509 = vmatprep.mubr.f32.mxu0 0.0
    %510 = vmatmul.mubr.f32.gmra.mrb[0].mxu0 %v441
    %v511 = vpop.f32.mrb[0].mxu0
    %v512 = vadd.f32 0.0, %v511
    %v513 = vpop.f32.mrb[0].mxu0
    %514 = vdwg.mxu0
    %515 = vrot.lane.b32.xlu0 %v183, 64
    %v516 = vpop.permute.xlu0 %515
    %v517 = vsel %vm212, %v183, 0
    %v519 = vsel %vm212, %v516, 0
    %521 = vmatprep.subr.mxu0 0.0
    %522 = vmatpush1.xpose.msra.mxu0 %v519
    %523 = vmatprep.subr.mxu0 0.0
    %524 = vmatpush1.xpose.msra.mxu0 0.0
    %525 = vmatprep.subr.mxu0 0.0
    %526 = vmatpush1.xpose.msra.mxu0 0.0
    %527 = vmatprep.subr.mxu0 0.0
    %528 = vmatpush1.xpose.msra.mxu0 0.0
    %529 = vmatprep.subr.mxu0 0.0
    %530 = vmatpush1.xpose.msra.mxu0 0.0
    %531 = vmatprep.subr.mxu0 0.0
    %532 = vmatpush1.xpose.msra.mxu0 0.0
    %533 = vmatprep.subr.mxu0 0.0
    %534 = vmatpush1.xpose.msra.mxu0 0.0
    %535 = vmatprep.subr.mxu0 0.0
    %536 = vmatpush1.xpose.msra.mxu0 0.0
    %537 = vmatprep.subr.mxu0 0.0
    %538 = vmatpush1.xpose.msra.mxu0 0.0
    %539 = vmatprep.subr.mxu0 0.0
    %540 = vmatpush1.xpose.msra.mxu0 0.0
    %541 = vmatprep.subr.mxu0 0.0
    %542 = vmatpush1.xpose.msra.mxu0 0.0
    %543 = vmatprep.subr.mxu0 0.0
    %544 = vmatpush1.xpose.msra.mxu0 0.0
    %545 = vmatprep.subr.mxu0 0.0
    %546 = vmatpush1.xpose.msra.mxu0 0.0
    %547 = vmatprep.subr.mxu0 0.0
    %548 = vmatpush1.xpose.msra.mxu0 0.0
    %549 = vmatprep.subr.mxu0 0.0
    %550 = vmatpush1.xpose.msra.mxu0 0.0
    %551 = vmatprep.subr.mxu0 0.0
    %552 = vmatpush1.xpose.msra.mxu0 0.0
    %553 = vmatprep.subr.mxu0 0.0
    %554 = vmatpush1.xpose.msra.mxu0 0.0
    %555 = vmatprep.subr.mxu0 0.0
    %556 = vmatpush1.xpose.msra.mxu0 0.0
    %557 = vmatprep.subr.mxu0 0.0
    %558 = vmatpush1.xpose.msra.mxu0 0.0
    %559 = vmatprep.subr.mxu0 0.0
    %560 = vmatpush1.xpose.msra.mxu0 0.0
    %561 = vmatprep.subr.mxu0 0.0
    %562 = vmatpush1.xpose.msra.mxu0 0.0
    %563 = vmatprep.subr.mxu0 0.0
    %564 = vmatpush1.xpose.msra.mxu0 0.0
    %565 = vmatprep.subr.mxu0 0.0
    %566 = vmatpush1.xpose.msra.mxu0 0.0
    %567 = vmatprep.subr.mxu0 0.0
    %568 = vmatpush1.xpose.msra.mxu0 0.0
    %569 = vmatprep.subr.mxu0 0.0
    %570 = vmatpush1.xpose.msra.mxu0 0.0
    %571 = vmatprep.subr.mxu0 0.0
    %572 = vmatpush1.xpose.msra.mxu0 0.0
    %573 = vmatprep.subr.mxu0 0.0
    %574 = vmatpush1.xpose.msra.mxu0 0.0
    %575 = vmatprep.subr.mxu0 0.0
    %576 = vmatpush1.xpose.msra.mxu0 0.0
    %577 = vmatprep.subr.mxu0 0.0
    %578 = vmatpush1.xpose.msra.mxu0 0.0
    %579 = vmatprep.subr.mxu0 0.0
    %580 = vmatpush1.xpose.msra.mxu0 0.0
    %581 = vmatprep.subr.mxu0 0.0
    %582 = vmatpush1.xpose.msra.mxu0 0.0
    %583 = vmatprep.subr.mxu0 0.0
    %584 = vmatpush1.xpose.msra.mxu0 0.0
    %585 = vmatprep.mubr.f32.mxu0 0.0
    %586 = vmatmul.mubr.f32.gmra.mrb[0].mxu0 %v517
    %v587 = vpop.f32.mrb[0].mxu0
    %v588 = vadd.f32 0.0, %v587
    %v589 = vpop.f32.mrb[0].mxu0
    %590 = vdwg.mxu0
    %591 = vrot.lane.b32.xlu0 %v185, 64
    %v592 = vpop.permute.xlu0 %591
    %v593 = vsel %vm212, %v185, 0
    %v595 = vsel %vm212, %v592, 0
    %597 = vmatprep.subr.mxu0 0.0
    %598 = vmatpush1.xpose.msra.mxu0 %v595
    %599 = vmatprep.subr.mxu0 0.0
    %600 = vmatpush1.xpose.msra.mxu0 0.0
    %601 = vmatprep.subr.mxu0 0.0
    %602 = vmatpush1.xpose.msra.mxu0 0.0
    %603 = vmatprep.subr.mxu0 0.0
    %604 = vmatpush1.xpose.msra.mxu0 0.0
    %605 = vmatprep.subr.mxu0 0.0
    %606 = vmatpush1.xpose.msra.mxu0 0.0
    %607 = vmatprep.subr.mxu0 0.0
    %608 = vmatpush1.xpose.msra.mxu0 0.0
    %609 = vmatprep.subr.mxu0 0.0
    %610 = vmatpush1.xpose.msra.mxu0 0.0
    %611 = vmatprep.subr.mxu0 0.0
    %612 = vmatpush1.xpose.msra.mxu0 0.0
    %613 = vmatprep.subr.mxu0 0.0
    %614 = vmatpush1.xpose.msra.mxu0 0.0
    %615 = vmatprep.subr.mxu0 0.0
    %616 = vmatpush1.xpose.msra.mxu0 0.0
    %617 = vmatprep.subr.mxu0 0.0
    %618 = vmatpush1.xpose.msra.mxu0 0.0
    %619 = vmatprep.subr.mxu0 0.0
    %620 = vmatpush1.xpose.msra.mxu0 0.0
    %621 = vmatprep.subr.mxu0 0.0
    %622 = vmatpush1.xpose.msra.mxu0 0.0
    %623 = vmatprep.subr.mxu0 0.0
    %624 = vmatpush1.xpose.msra.mxu0 0.0
    %625 = vmatprep.subr.mxu0 0.0
    %626 = vmatpush1.xpose.msra.mxu0 0.0
    %627 = vmatprep.subr.mxu0 0.0
    %628 = vmatpush1.xpose.msra.mxu0 0.0
    %629 = vmatprep.subr.mxu0 0.0
    %630 = vmatpush1.xpose.msra.mxu0 0.0
    %631 = vmatprep.subr.mxu0 0.0
    %632 = vmatpush1.xpose.msra.mxu0 0.0
    %633 = vmatprep.subr.mxu0 0.0
    %634 = vmatpush1.xpose.msra.mxu0 0.0
    %635 = vmatprep.subr.mxu0 0.0
    %636 = vmatpush1.xpose.msra.mxu0 0.0
    %637 = vmatprep.subr.mxu0 0.0
    %638 = vmatpush1.xpose.msra.mxu0 0.0
    %639 = vmatprep.subr.mxu0 0.0
    %640 = vmatpush1.xpose.msra.mxu0 0.0
    %641 = vmatprep.subr.mxu0 0.0
    %642 = vmatpush1.xpose.msra.mxu0 0.0
    %643 = vmatprep.subr.mxu0 0.0
    %644 = vmatpush1.xpose.msra.mxu0 0.0
    %645 = vmatprep.subr.mxu0 0.0
    %646 = vmatpush1.xpose.msra.mxu0 0.0
    %647 = vmatprep.subr.mxu0 0.0
    %648 = vmatpush1.xpose.msra.mxu0 0.0
    %649 = vmatprep.subr.mxu0 0.0
    %650 = vmatpush1.xpose.msra.mxu0 0.0
    %651 = vmatprep.subr.mxu0 0.0
    %652 = vmatpush1.xpose.msra.mxu0 0.0
    %653 = vmatprep.subr.mxu0 0.0
    %654 = vmatpush1.xpose.msra.mxu0 0.0
    %655 = vmatprep.subr.mxu0 0.0
    %656 = vmatpush1.xpose.msra.mxu0 0.0
    %657 = vmatprep.subr.mxu0 0.0
    %658 = vmatpush1.xpose.msra.mxu0 0.0
    %659 = vmatprep.subr.mxu0 0.0
    %660 = vmatpush1.xpose.msra.mxu0 0.0
    %661 = vmatprep.mubr.f32.mxu0 0.0
    %662 = vmatmul.mubr.f32.gmra.mrb[0].mxu0 %v593
    %v663 = vpop.f32.mrb[0].mxu0
    %v664 = vadd.f32 0.0, %v663
    %v665 = vpop.f32.mrb[0].mxu0
    %666 = vdwg.mxu0
    %667 = vrot.lane.b32.xlu0 %v187, 64
    %v668 = vpop.permute.xlu0 %667
    %v669 = vsel %vm212, %v187, 0
    %v671 = vsel %vm212, %v668, 0
    %673 = vmatprep.subr.mxu0 0.0
    %674 = vmatpush1.xpose.msra.mxu0 %v671
    %675 = vmatprep.subr.mxu0 0.0
    %676 = vmatpush1.xpose.msra.mxu0 0.0
    %677 = vmatprep.subr.mxu0 0.0
    %678 = vmatpush1.xpose.msra.mxu0 0.0
    %679 = vmatprep.subr.mxu0 0.0
    %680 = vmatpush1.xpose.msra.mxu0 0.0
    %681 = vmatprep.subr.mxu0 0.0
    %682 = vmatpush1.xpose.msra.mxu0 0.0
    %683 = vmatprep.subr.mxu0 0.0
    %684 = vmatpush1.xpose.msra.mxu0 0.0
    %685 = vmatprep.subr.mxu0 0.0
    %686 = vmatpush1.xpose.msra.mxu0 0.0
    %687 = vmatprep.subr.mxu0 0.0
    %688 = vmatpush1.xpose.msra.mxu0 0.0
    %689 = vmatprep.subr.mxu0 0.0
    %690 = vmatpush1.xpose.msra.mxu0 0.0
    %691 = vmatprep.subr.mxu0 0.0
    %692 = vmatpush1.xpose.msra.mxu0 0.0
    %693 = vmatprep.subr.mxu0 0.0
    %694 = vmatpush1.xpose.msra.mxu0 0.0
    %695 = vmatprep.subr.mxu0 0.0
    %696 = vmatpush1.xpose.msra.mxu0 0.0
    %697 = vmatprep.subr.mxu0 0.0
    %698 = vmatpush1.xpose.msra.mxu0 0.0
    %699 = vmatprep.subr.mxu0 0.0
    %700 = vmatpush1.xpose.msra.mxu0 0.0
    %701 = vmatprep.subr.mxu0 0.0
    %702 = vmatpush1.xpose.msra.mxu0 0.0
    %703 = vmatprep.subr.mxu0 0.0
    %704 = vmatpush1.xpose.msra.mxu0 0.0
    %705 = vmatprep.subr.mxu0 0.0
    %706 = vmatpush1.xpose.msra.mxu0 0.0
    %707 = vmatprep.subr.mxu0 0.0
    %708 = vmatpush1.xpose.msra.mxu0 0.0
    %709 = vmatprep.subr.mxu0 0.0
    %710 = vmatpush1.xpose.msra.mxu0 0.0
    %711 = vmatprep.subr.mxu0 0.0
    %712 = vmatpush1.xpose.msra.mxu0 0.0
    %713 = vmatprep.subr.mxu0 0.0
    %714 = vmatpush1.xpose.msra.mxu0 0.0
    %715 = vmatprep.subr.mxu0 0.0
    %716 = vmatpush1.xpose.msra.mxu0 0.0
    %717 = vmatprep.subr.mxu0 0.0
    %718 = vmatpush1.xpose.msra.mxu0 0.0
    %719 = vmatprep.subr.mxu0 0.0
    %720 = vmatpush1.xpose.msra.mxu0 0.0
    %721 = vmatprep.subr.mxu0 0.0
    %722 = vmatpush1.xpose.msra.mxu0 0.0
    %723 = vmatprep.subr.mxu0 0.0
    %724 = vmatpush1.xpose.msra.mxu0 0.0
    %725 = vmatprep.subr.mxu0 0.0
    %726 = vmatpush1.xpose.msra.mxu0 0.0
    %727 = vmatprep.subr.mxu0 0.0
    %728 = vmatpush1.xpose.msra.mxu0 0.0
    %729 = vmatprep.subr.mxu0 0.0
    %730 = vmatpush1.xpose.msra.mxu0 0.0
    %731 = vmatprep.subr.mxu0 0.0
    %732 = vmatpush1.xpose.msra.mxu0 0.0
    %733 = vmatprep.subr.mxu0 0.0
    %734 = vmatpush1.xpose.msra.mxu0 0.0
    %735 = vmatprep.subr.mxu0 0.0
    %736 = vmatpush1.xpose.msra.mxu0 0.0
    %737 = vmatprep.mubr.f32.mxu0 0.0
    %738 = vmatmul.mubr.f32.gmra.mrb[0].mxu0 %v669
    %v739 = vpop.f32.mrb[0].mxu0
    %v740 = vadd.f32 0.0, %v739
    %v741 = vpop.f32.mrb[0].mxu0
    %742 = vdwg.mxu0
    %743 = vrot.lane.b32.xlu0 %v189, 64
    %v744 = vpop.permute.xlu0 %743
    %v745 = vsel %vm212, %v189, 0
    %v747 = vsel %vm212, %v744, 0
    %749 = vmatprep.subr.mxu0 0.0
    %750 = vmatpush1.xpose.msra.mxu0 %v747
    %751 = vmatprep.subr.mxu0 0.0
    %752 = vmatpush1.xpose.msra.mxu0 0.0
    %753 = vmatprep.subr.mxu0 0.0
    %754 = vmatpush1.xpose.msra.mxu0 0.0
    %755 = vmatprep.subr.mxu0 0.0
    %756 = vmatpush1.xpose.msra.mxu0 0.0
    %757 = vmatprep.subr.mxu0 0.0
    %758 = vmatpush1.xpose.msra.mxu0 0.0
    %759 = vmatprep.subr.mxu0 0.0
    %760 = vmatpush1.xpose.msra.mxu0 0.0
    %761 = vmatprep.subr.mxu0 0.0
    %762 = vmatpush1.xpose.msra.mxu0 0.0
    %763 = vmatprep.subr.mxu0 0.0
    %764 = vmatpush1.xpose.msra.mxu0 0.0
    %765 = vmatprep.subr.mxu0 0.0
    %766 = vmatpush1.xpose.msra.mxu0 0.0
    %767 = vmatprep.subr.mxu0 0.0
    %768 = vmatpush1.xpose.msra.mxu0 0.0
    %769 = vmatprep.subr.mxu0 0.0
    %770 = vmatpush1.xpose.msra.mxu0 0.0
    %771 = vmatprep.subr.mxu0 0.0
    %772 = vmatpush1.xpose.msra.mxu0 0.0
    %773 = vmatprep.subr.mxu0 0.0
    %774 = vmatpush1.xpose.msra.mxu0 0.0
    %775 = vmatprep.subr.mxu0 0.0
    %776 = vmatpush1.xpose.msra.mxu0 0.0
    %777 = vmatprep.subr.mxu0 0.0
    %778 = vmatpush1.xpose.msra.mxu0 0.0
    %779 = vmatprep.subr.mxu0 0.0
    %780 = vmatpush1.xpose.msra.mxu0 0.0
    %781 = vmatprep.subr.mxu0 0.0
    %782 = vmatpush1.xpose.msra.mxu0 0.0
    %783 = vmatprep.subr.mxu0 0.0
    %784 = vmatpush1.xpose.msra.mxu0 0.0
    %785 = vmatprep.subr.mxu0 0.0
    %786 = vmatpush1.xpose.msra.mxu0 0.0
    %787 = vmatprep.subr.mxu0 0.0
    %788 = vmatpush1.xpose.msra.mxu0 0.0
    %789 = vmatprep.subr.mxu0 0.0
    %790 = vmatpush1.xpose.msra.mxu0 0.0
    %791 = vmatprep.subr.mxu0 0.0
    %792 = vmatpush1.xpose.msra.mxu0 0.0
    %793 = vmatprep.subr.mxu0 0.0
    %794 = vmatpush1.xpose.msra.mxu0 0.0
    %795 = vmatprep.subr.mxu0 0.0
    %796 = vmatpush1.xpose.msra.mxu0 0.0
    %797 = vmatprep.subr.mxu0 0.0
    %798 = vmatpush1.xpose.msra.mxu0 0.0
    %799 = vmatprep.subr.mxu0 0.0
    %800 = vmatpush1.xpose.msra.mxu0 0.0
    %801 = vmatprep.subr.mxu0 0.0
    %802 = vmatpush1.xpose.msra.mxu0 0.0
    %803 = vmatprep.subr.mxu0 0.0
    %804 = vmatpush1.xpose.msra.mxu0 0.0
    %805 = vmatprep.subr.mxu0 0.0
    %806 = vmatpush1.xpose.msra.mxu0 0.0
    %807 = vmatprep.subr.mxu0 0.0
    %808 = vmatpush1.xpose.msra.mxu0 0.0
    %809 = vmatprep.subr.mxu0 0.0
    %810 = vmatpush1.xpose.msra.mxu0 0.0
    %811 = vmatprep.subr.mxu0 0.0
    %812 = vmatpush1.xpose.msra.mxu0 0.0
    %813 = vmatprep.mubr.f32.mxu0 0.0
    %814 = vmatmul.mubr.f32.gmra.mrb[0].mxu0 %v745
    %v815 = vpop.f32.mrb[0].mxu0
    %v816 = vadd.f32 0.0, %v815
    %v817 = vpop.f32.mrb[0].mxu0
    %818 = vdwg.mxu0
    %v819 = vmul.f32 %v284, 0.25
    %v820 = vmul.f32 %v360, 0.25
    %v821 = vmul.f32 %v436, 0.25
    %v822 = vmul.f32 %v512, 0.25
    %v823 = vmul.f32 %v588, 0.25
    %v824 = vmul.f32 %v664, 0.25
    %v825 = vmul.f32 %v740, 0.25
    %v826 = vmul.f32 %v816, 0.25
    %vm827 = vcmask 64512
    %v828 = vsel %vm827, %v819, -inf
    %829 = vmax.xlane.f32.xlu0 %v828
    %v830 = vpop.xlane.xlu0 %829
    %v831 = vsel %vm827, %v820, -inf
    %832 = vmax.xlane.f32.xlu0 %v831
    %v833 = vpop.xlane.xlu0 %832
    %v834 = vsel %vm827, %v821, -inf
    %835 = vmax.xlane.f32.xlu0 %v834
    %v836 = vpop.xlane.xlu0 %835
    %v837 = vsel %vm827, %v822, -inf
    %838 = vmax.xlane.f32.xlu0 %v837
    %v839 = vpop.xlane.xlu0 %838
    %v840 = vsel %vm827, %v823, -inf
    %841 = vmax.xlane.f32.xlu0 %v840
    %v842 = vpop.xlane.xlu0 %841
    %v843 = vsel %vm827, %v824, -inf
    %844 = vmax.xlane.f32.xlu0 %v843
    %v845 = vpop.xlane.xlu0 %844
    %v846 = vsel %vm827, %v825, -inf
    %847 = vmax.xlane.f32.xlu0 %v846
    %v848 = vpop.xlane.xlu0 %847
    %v849 = vsel %vm827, %v826, -inf
    %850 = vmax.xlane.f32.xlu0 %v849
    %v851 = vpop.xlane.xlu0 %850
    %v852 = vsub.f32 %v819, %v830
    %v853 = vsub.f32 %v820, %v833
    %v854 = vsub.f32 %v821, %v836
    %v855 = vsub.f32 %v822, %v839
    %v856 = vsub.f32 %v823, %v842
    %v857 = vsub.f32 %v824, %v845
    %v858 = vsub.f32 %v825, %v848
    %v859 = vsub.f32 %v826, %v851
    %v860 = vmul.f32 %v852, 1.442695
    %v861 = vpow.pop %v860
    %v862 = vmul.f32 %v853, 1.442695
    %v863 = vpow.pop %v862
    %v864 = vmul.f32 %v854, 1.442695
    %v865 = vpow.pop %v864
    %v866 = vmul.f32 %v855, 1.442695
    %v867 = vpow.pop %v866
    %v868 = vmul.f32 %v856, 1.442695
    %v869 = vpow.pop %v868
    %v870 = vmul.f32 %v857, 1.442695
    %v871 = vpow.pop %v870
    %v872 = vmul.f32 %v858, 1.442695
    %v873 = vpow.pop %v872
    %v874 = vmul.f32 %v859, 1.442695
    %v875 = vpow.pop %v874
    %v876 = vsel %vm827, %v861, 0.0
    %877 = vadd.xlane.f32.xlu0 %v876
    %v878 = vpop.xlane.xlu0 %877
    %v879 = vsel %vm827, %v863, 0.0
    %880 = vadd.xlane.f32.xlu0 %v879
    %v881 = vpop.xlane.xlu0 %880
    %v882 = vsel %vm827, %v865, 0.0
    %883 = vadd.xlane.f32.xlu0 %v882
    %v884 = vpop.xlane.xlu0 %883
    %v885 = vsel %vm827, %v867, 0.0
    %886 = vadd.xlane.f32.xlu0 %v885
    %v887 = vpop.xlane.xlu0 %886
    %v888 = vsel %vm827, %v869, 0.0
    %889 = vadd.xlane.f32.xlu0 %v888
    %v890 = vpop.xlane.xlu0 %889
    %v891 = vsel %vm827, %v871, 0.0
    %892 = vadd.xlane.f32.xlu0 %v891
    %v893 = vpop.xlane.xlu0 %892
    %v894 = vsel %vm827, %v873, 0.0
    %895 = vadd.xlane.f32.xlu0 %v894
    %v896 = vpop.xlane.xlu0 %895
    %v897 = vsel %vm827, %v875, 0.0
    %898 = vadd.xlane.f32.xlu0 %v897
    %v899 = vpop.xlane.xlu0 %898
    %v900 = vrcp.pop %v878
    %v901 = vrcp.pop %v881
    %v902 = vrcp.pop %v884
    %v903 = vrcp.pop %v887
    %v904 = vrcp.pop %v890
    %v905 = vrcp.pop %v893
    %v906 = vrcp.pop %v896
    %v907 = vrcp.pop %v899
    %v908 = vmul.f32 %v861, %v900
    %v909 = vmul.f32 %v863, %v901
    %v910 = vmul.f32 %v865, %v902
    %v911 = vmul.f32 %v867, %v903
    %v912 = vmul.f32 %v869, %v904
    %v913 = vmul.f32 %v871, %v905
    %v914 = vmul.f32 %v873, %v906
    %v915 = vmul.f32 %v875, %v907
    %v917 = vsel %vm827, %v908, 0
    %919 = vmatprep.subr.mxu0 0.0
    %920 = vmatpush1.msra.mxu0 %v168
    %921 = vmatprep.subr.mxu0 0.0
    %922 = vmatpush1.msra.mxu0 0.0
    %923 = vmatprep.subr.mxu0 0.0
    %924 = vmatpush1.msra.mxu0 0.0
    %925 = vmatprep.subr.mxu0 0.0
    %926 = vmatpush1.msra.mxu0 0.0
    %927 = vmatprep.subr.mxu0 0.0
    %928 = vmatpush1.msra.mxu0 0.0
    %929 = vmatprep.subr.mxu0 0.0
    %930 = vmatpush1.msra.mxu0 0.0
    %931 = vmatprep.subr.mxu0 0.0
    %932 = vmatpush1.msra.mxu0 0.0
    %933 = vmatprep.subr.mxu0 0.0
    %934 = vmatpush1.msra.mxu0 0.0
    %935 = vmatprep.subr.mxu0 0.0
    %936 = vmatpush1.msra.mxu0 0.0
    %937 = vmatprep.subr.mxu0 0.0
    %938 = vmatpush1.msra.mxu0 0.0
    %939 = vmatprep.subr.mxu0 0.0
    %940 = vmatpush1.msra.mxu0 0.0
    %941 = vmatprep.subr.mxu0 0.0
    %942 = vmatpush1.msra.mxu0 0.0
    %943 = vmatprep.subr.mxu0 0.0
    %944 = vmatpush1.msra.mxu0 0.0
    %945 = vmatprep.subr.mxu0 0.0
    %946 = vmatpush1.msra.mxu0 0.0
    %947 = vmatprep.subr.mxu0 0.0
    %948 = vmatpush1.msra.mxu0 0.0
    %949 = vmatprep.subr.mxu0 0.0
    %950 = vmatpush1.msra.mxu0 0.0
    %951 = vmatprep.subr.mxu0 0.0
    %952 = vmatpush1.msra.mxu0 0.0
    %953 = vmatprep.subr.mxu0 0.0
    %954 = vmatpush1.msra.mxu0 0.0
    %955 = vmatprep.subr.mxu0 0.0
    %956 = vmatpush1.msra.mxu0 0.0
    %957 = vmatprep.subr.mxu0 0.0
    %958 = vmatpush1.msra.mxu0 0.0
    %959 = vmatprep.subr.mxu0 0.0
    %960 = vmatpush1.msra.mxu0 0.0
    %961 = vmatprep.subr.mxu0 0.0
    %962 = vmatpush1.msra.mxu0 0.0
    %963 = vmatprep.subr.mxu0 0.0
    %964 = vmatpush1.msra.mxu0 0.0
    %965 = vmatprep.subr.mxu0 0.0
    %966 = vmatpush1.msra.mxu0 0.0
    %967 = vmatprep.subr.mxu0 0.0
    %968 = vmatpush1.msra.mxu0 0.0
    %969 = vmatprep.subr.mxu0 0.0
    %970 = vmatpush1.msra.mxu0 0.0
    %971 = vmatprep.subr.mxu0 0.0
    %972 = vmatpush1.msra.mxu0 0.0
    %973 = vmatprep.subr.mxu0 0.0
    %974 = vmatpush1.msra.mxu0 0.0
    %975 = vmatprep.subr.mxu0 0.0
    %976 = vmatpush1.msra.mxu0 0.0
    %977 = vmatprep.subr.mxu0 0.0
    %978 = vmatpush1.msra.mxu0 0.0
    %979 = vmatprep.subr.mxu0 0.0
    %980 = vmatpush1.msra.mxu0 0.0
    %981 = vmatprep.subr.mxu0 0.0
    %982 = vmatpush1.msra.mxu0 0.0
    %983 = vmatprep.mubr.f32.mxu0 0.0
    %984 = vmatmul.mubr.f32.gmra.mrb[0].mxu0 %v917
    %v985 = vpop.f32.mrb[0].mxu0
    %v986 = vadd.f32 0.0, %v985
    %v987 = vpop.f32.mrb[0].mxu0
    %988 = vdwg.mxu0
    %v990 = vsel %vm827, %v909, 0
    %992 = vmatprep.subr.mxu0 0.0
    %993 = vmatpush1.msra.mxu0 %v174
    %994 = vmatprep.subr.mxu0 0.0
    %995 = vmatpush1.msra.mxu0 0.0
    %996 = vmatprep.subr.mxu0 0.0
    %997 = vmatpush1.msra.mxu0 0.0
    %998 = vmatprep.subr.mxu0 0.0
    %999 = vmatpush1.msra.mxu0 0.0
    %1000 = vmatprep.subr.mxu0 0.0
    %1001 = vmatpush1.msra.mxu0 0.0
    %1002 = vmatprep.subr.mxu0 0.0
    %1003 = vmatpush1.msra.mxu0 0.0
    %1004 = vmatprep.subr.mxu0 0.0
    %1005 = vmatpush1.msra.mxu0 0.0
    %1006 = vmatprep.subr.mxu0 0.0
    %1007 = vmatpush1.msra.mxu0 0.0
    %1008 = vmatprep.subr.mxu0 0.0
    %1009 = vmatpush1.msra.mxu0 0.0
    %1010 = vmatprep.subr.mxu0 0.0
    %1011 = vmatpush1.msra.mxu0 0.0
    %1012 = vmatprep.subr.mxu0 0.0
    %1013 = vmatpush1.msra.mxu0 0.0
    %1014 = vmatprep.subr.mxu0 0.0
    %1015 = vmatpush1.msra.mxu0 0.0
    %1016 = vmatprep.subr.mxu0 0.0
    %1017 = vmatpush1.msra.mxu0 0.0
    %1018 = vmatprep.subr.mxu0 0.0
    %1019 = vmatpush1.msra.mxu0 0.0
    %1020 = vmatprep.subr.mxu0 0.0
    %1021 = vmatpush1.msra.mxu0 0.0
    %1022 = vmatprep.subr.mxu0 0.0
    %1023 = vmatpush1.msra.mxu0 0.0
    %1024 = vmatprep.subr.mxu0 0.0
    %1025 = vmatpush1.msra.mxu0 0.0
    %1026 = vmatprep.subr.mxu0 0.0
    %1027 = vmatpush1.msra.mxu0 0.0
    %1028 = vmatprep.subr.mxu0 0.0
    %1029 = vmatpush1.msra.mxu0 0.0
    %1030 = vmatprep.subr.mxu0 0.0
    %1031 = vmatpush1.msra.mxu0 0.0
    %1032 = vmatprep.subr.mxu0 0.0
    %1033 = vmatpush1.msra.mxu0 0.0
    %1034 = vmatprep.subr.mxu0 0.0
    %1035 = vmatpush1.msra.mxu0 0.0
    %1036 = vmatprep.subr.mxu0 0.0
    %1037 = vmatpush1.msra.mxu0 0.0
    %1038 = vmatprep.subr.mxu0 0.0
    %1039 = vmatpush1.msra.mxu0 0.0
    %1040 = vmatprep.subr.mxu0 0.0
    %1041 = vmatpush1.msra.mxu0 0.0
    %1042 = vmatprep.subr.mxu0 0.0
    %1043 = vmatpush1.msra.mxu0 0.0
    %1044 = vmatprep.subr.mxu0 0.0
    %1045 = vmatpush1.msra.mxu0 0.0
    %1046 = vmatprep.subr.mxu0 0.0
    %1047 = vmatpush1.msra.mxu0 0.0
    %1048 = vmatprep.subr.mxu0 0.0
    %1049 = vmatpush1.msra.mxu0 0.0
    %1050 = vmatprep.subr.mxu0 0.0
    %1051 = vmatpush1.msra.mxu0 0.0
    %1052 = vmatprep.subr.mxu0 0.0
    %1053 = vmatpush1.msra.mxu0 0.0
    %1054 = vmatprep.subr.mxu0 0.0
    %1055 = vmatpush1.msra.mxu0 0.0
    %1056 = vmatprep.mubr.f32.mxu0 0.0
    %1057 = vmatmul.mubr.f32.gmra.mrb[0].mxu0 %v990
    %v1058 = vpop.f32.mrb[0].mxu0
    %v1059 = vadd.f32 0.0, %v1058
    %v1060 = vpop.f32.mrb[0].mxu0
    %1061 = vdwg.mxu0
    %v1063 = vsel %vm827, %v910, 0
    %1065 = vmatprep.subr.mxu0 0.0
    %1066 = vmatpush1.msra.mxu0 %v193
    %1067 = vmatprep.subr.mxu0 0.0
    %1068 = vmatpush1.msra.mxu0 0.0
    %1069 = vmatprep.subr.mxu0 0.0
    %1070 = vmatpush1.msra.mxu0 0.0
    %1071 = vmatprep.subr.mxu0 0.0
    %1072 = vmatpush1.msra.mxu0 0.0
    %1073 = vmatprep.subr.mxu0 0.0
    %1074 = vmatpush1.msra.mxu0 0.0
    %1075 = vmatprep.subr.mxu0 0.0
    %1076 = vmatpush1.msra.mxu0 0.0
    %1077 = vmatprep.subr.mxu0 0.0
    %1078 = vmatpush1.msra.mxu0 0.0
    %1079 = vmatprep.subr.mxu0 0.0
    %1080 = vmatpush1.msra.mxu0 0.0
    %1081 = vmatprep.subr.mxu0 0.0
    %1082 = vmatpush1.msra.mxu0 0.0
    %1083 = vmatprep.subr.mxu0 0.0
    %1084 = vmatpush1.msra.mxu0 0.0
    %1085 = vmatprep.subr.mxu0 0.0
    %1086 = vmatpush1.msra.mxu0 0.0
    %1087 = vmatprep.subr.mxu0 0.0
    %1088 = vmatpush1.msra.mxu0 0.0
    %1089 = vmatprep.subr.mxu0 0.0
    %1090 = vmatpush1.msra.mxu0 0.0
    %1091 = vmatprep.subr.mxu0 0.0
    %1092 = vmatpush1.msra.mxu0 0.0
    %1093 = vmatprep.subr.mxu0 0.0
    %1094 = vmatpush1.msra.mxu0 0.0
    %1095 = vmatprep.subr.mxu0 0.0
    %1096 = vmatpush1.msra.mxu0 0.0
    %1097 = vmatprep.subr.mxu0 0.0
    %1098 = vmatpush1.msra.mxu0 0.0
    %1099 = vmatprep.subr.mxu0 0.0
    %1100 = vmatpush1.msra.mxu0 0.0
    %1101 = vmatprep.subr.mxu0 0.0
    %1102 = vmatpush1.msra.mxu0 0.0
    %1103 = vmatprep.subr.mxu0 0.0
    %1104 = vmatpush1.msra.mxu0 0.0
    %1105 = vmatprep.subr.mxu0 0.0
    %1106 = vmatpush1.msra.mxu0 0.0
    %1107 = vmatprep.subr.mxu0 0.0
    %1108 = vmatpush1.msra.mxu0 0.0
    %1109 = vmatprep.subr.mxu0 0.0
    %1110 = vmatpush1.msra.mxu0 0.0
    %1111 = vmatprep.subr.mxu0 0.0
    %1112 = vmatpush1.msra.mxu0 0.0
    %1113 = vmatprep.subr.mxu0 0.0
    %1114 = vmatpush1.msra.mxu0 0.0
    %1115 = vmatprep.subr.mxu0 0.0
    %1116 = vmatpush1.msra.mxu0 0.0
    %1117 = vmatprep.subr.mxu0 0.0
    %1118 = vmatpush1.msra.mxu0 0.0
    %1119 = vmatprep.subr.mxu0 0.0
    %1120 = vmatpush1.msra.mxu0 0.0
    %1121 = vmatprep.subr.mxu0 0.0
    %1122 = vmatpush1.msra.mxu0 0.0
    %1123 = vmatprep.subr.mxu0 0.0
    %1124 = vmatpush1.msra.mxu0 0.0
    %1125 = vmatprep.subr.mxu0 0.0
    %1126 = vmatpush1.msra.mxu0 0.0
    %1127 = vmatprep.subr.mxu0 0.0
    %1128 = vmatpush1.msra.mxu0 0.0
    %1129 = vmatprep.mubr.f32.mxu0 0.0
    %1130 = vmatmul.mubr.f32.gmra.mrb[0].mxu0 %v1063
    %v1131 = vpop.f32.mrb[0].mxu0
    %v1132 = vadd.f32 0.0, %v1131
    %v1133 = vpop.f32.mrb[0].mxu0
    %1134 = vdwg.mxu0
    %v1136 = vsel %vm827, %v911, 0
    %1138 = vmatprep.subr.mxu0 0.0
    %1139 = vmatpush1.msra.mxu0 %v195
    %1140 = vmatprep.subr.mxu0 0.0
    %1141 = vmatpush1.msra.mxu0 0.0
    %1142 = vmatprep.subr.mxu0 0.0
    %1143 = vmatpush1.msra.mxu0 0.0
    %1144 = vmatprep.subr.mxu0 0.0
    %1145 = vmatpush1.msra.mxu0 0.0
    %1146 = vmatprep.subr.mxu0 0.0
    %1147 = vmatpush1.msra.mxu0 0.0
    %1148 = vmatprep.subr.mxu0 0.0
    %1149 = vmatpush1.msra.mxu0 0.0
    %1150 = vmatprep.subr.mxu0 0.0
    %1151 = vmatpush1.msra.mxu0 0.0
    %1152 = vmatprep.subr.mxu0 0.0
    %1153 = vmatpush1.msra.mxu0 0.0
    %1154 = vmatprep.subr.mxu0 0.0
    %1155 = vmatpush1.msra.mxu0 0.0
    %1156 = vmatprep.subr.mxu0 0.0
    %1157 = vmatpush1.msra.mxu0 0.0
    %1158 = vmatprep.subr.mxu0 0.0
    %1159 = vmatpush1.msra.mxu0 0.0
    %1160 = vmatprep.subr.mxu0 0.0
    %1161 = vmatpush1.msra.mxu0 0.0
    %1162 = vmatprep.subr.mxu0 0.0
    %1163 = vmatpush1.msra.mxu0 0.0
    %1164 = vmatprep.subr.mxu0 0.0
    %1165 = vmatpush1.msra.mxu0 0.0
    %1166 = vmatprep.subr.mxu0 0.0
    %1167 = vmatpush1.msra.mxu0 0.0
    %1168 = vmatprep.subr.mxu0 0.0
    %1169 = vmatpush1.msra.mxu0 0.0
    %1170 = vmatprep.subr.mxu0 0.0
    %1171 = vmatpush1.msra.mxu0 0.0
    %1172 = vmatprep.subr.mxu0 0.0
    %1173 = vmatpush1.msra.mxu0 0.0
    %1174 = vmatprep.subr.mxu0 0.0
    %1175 = vmatpush1.msra.mxu0 0.0
    %1176 = vmatprep.subr.mxu0 0.0
    %1177 = vmatpush1.msra.mxu0 0.0
    %1178 = vmatprep.subr.mxu0 0.0
    %1179 = vmatpush1.msra.mxu0 0.0
    %1180 = vmatprep.subr.mxu0 0.0
    %1181 = vmatpush1.msra.mxu0 0.0
    %1182 = vmatprep.subr.mxu0 0.0
    %1183 = vmatpush1.msra.mxu0 0.0
    %1184 = vmatprep.subr.mxu0 0.0
    %1185 = vmatpush1.msra.mxu0 0.0
    %1186 = vmatprep.subr.mxu0 0.0
    %1187 = vmatpush1.msra.mxu0 0.0
    %1188 = vmatprep.subr.mxu0 0.0
    %1189 = vmatpush1.msra.mxu0 0.0
    %1190 = vmatprep.subr.mxu0 0.0
    %1191 = vmatpush1.msra.mxu0 0.0
    %1192 = vmatprep.subr.mxu0 0.0
    %1193 = vmatpush1.msra.mxu0 0.0
    %1194 = vmatprep.subr.mxu0 0.0
    %1195 = vmatpush1.msra.mxu0 0.0
    %1196 = vmatprep.subr.mxu0 0.0
    %1197 = vmatpush1.msra.mxu0 0.0
    %1198 = vmatprep.subr.mxu0 0.0
    %1199 = vmatpush1.msra.mxu0 0.0
    %1200 = vmatprep.subr.mxu0 0.0
    %1201 = vmatpush1.msra.mxu0 0.0
    %1202 = vmatprep.mubr.f32.mxu0 0.0
    %1203 = vmatmul.mubr.f32.gmra.mrb[0].mxu0 %v1136
    %v1204 = vpop.f32.mrb[0].mxu0
    %v1205 = vadd.f32 0.0, %v1204
    %v1206 = vpop.f32.mrb[0].mxu0
    %1207 = vdwg.mxu0
    %v1209 = vsel %vm827, %v912, 0
    %1211 = vmatprep.subr.mxu0 0.0
    %1212 = vmatpush1.msra.mxu0 %v199
    %1213 = vmatprep.subr.mxu0 0.0
    %1214 = vmatpush1.msra.mxu0 0.0
    %1215 = vmatprep.subr.mxu0 0.0
    %1216 = vmatpush1.msra.mxu0 0.0
    %1217 = vmatprep.subr.mxu0 0.0
    %1218 = vmatpush1.msra.mxu0 0.0
    %1219 = vmatprep.subr.mxu0 0.0
    %1220 = vmatpush1.msra.mxu0 0.0
    %1221 = vmatprep.subr.mxu0 0.0
    %1222 = vmatpush1.msra.mxu0 0.0
    %1223 = vmatprep.subr.mxu0 0.0
    %1224 = vmatpush1.msra.mxu0 0.0
    %1225 = vmatprep.subr.mxu0 0.0
    %1226 = vmatpush1.msra.mxu0 0.0
    %1227 = vmatprep.subr.mxu0 0.0
    %1228 = vmatpush1.msra.mxu0 0.0
    %1229 = vmatprep.subr.mxu0 0.0
    %1230 = vmatpush1.msra.mxu0 0.0
    %1231 = vmatprep.subr.mxu0 0.0
    %1232 = vmatpush1.msra.mxu0 0.0
    %1233 = vmatprep.subr.mxu0 0.0
    %1234 = vmatpush1.msra.mxu0 0.0
    %1235 = vmatprep.subr.mxu0 0.0
    %1236 = vmatpush1.msra.mxu0 0.0
    %1237 = vmatprep.subr.mxu0 0.0
    %1238 = vmatpush1.msra.mxu0 0.0
    %1239 = vmatprep.subr.mxu0 0.0
    %1240 = vmatpush1.msra.mxu0 0.0
    %1241 = vmatprep.subr.mxu0 0.0
    %1242 = vmatpush1.msra.mxu0 0.0
    %1243 = vmatprep.subr.mxu0 0.0
    %1244 = vmatpush1.msra.mxu0 0.0
    %1245 = vmatprep.subr.mxu0 0.0
    %1246 = vmatpush1.msra.mxu0 0.0
    %1247 = vmatprep.subr.mxu0 0.0
    %1248 = vmatpush1.msra.mxu0 0.0
    %1249 = vmatprep.subr.mxu0 0.0
    %1250 = vmatpush1.msra.mxu0 0.0
    %1251 = vmatprep.subr.mxu0 0.0
    %1252 = vmatpush1.msra.mxu0 0.0
    %1253 = vmatprep.subr.mxu0 0.0
    %1254 = vmatpush1.msra.mxu0 0.0
    %1255 = vmatprep.subr.mxu0 0.0
    %1256 = vmatpush1.msra.mxu0 0.0
    %1257 = vmatprep.subr.mxu0 0.0
    %1258 = vmatpush1.msra.mxu0 0.0
    %1259 = vmatprep.subr.mxu0 0.0
    %1260 = vmatpush1.msra.mxu0 0.0
    %1261 = vmatprep.subr.mxu0 0.0
    %1262 = vmatpush1.msra.mxu0 0.0
    %1263 = vmatprep.subr.mxu0 0.0
    %1264 = vmatpush1.msra.mxu0 0.0
    %1265 = vmatprep.subr.mxu0 0.0
    %1266 = vmatpush1.msra.mxu0 0.0
    %1267 = vmatprep.subr.mxu0 0.0
    %1268 = vmatpush1.msra.mxu0 0.0
    %1269 = vmatprep.subr.mxu0 0.0
    %1270 = vmatpush1.msra.mxu0 0.0
    %1271 = vmatprep.subr.mxu0 0.0
    %1272 = vmatpush1.msra.mxu0 0.0
    %1273 = vmatprep.subr.mxu0 0.0
    %1274 = vmatpush1.msra.mxu0 0.0
    %1275 = vmatprep.mubr.f32.mxu0 0.0
    %1276 = vmatmul.mubr.f32.gmra.mrb[0].mxu0 %v1209
    %v1277 = vpop.f32.mrb[0].mxu0
    %v1278 = vadd.f32 0.0, %v1277
    %v1279 = vpop.f32.mrb[0].mxu0
    %1280 = vdwg.mxu0
    %v1282 = vsel %vm827, %v913, 0
    %1284 = vmatprep.subr.mxu0 0.0
    %1285 = vmatpush1.msra.mxu0 %v201
    %1286 = vmatprep.subr.mxu0 0.0
    %1287 = vmatpush1.msra.mxu0 0.0
    %1288 = vmatprep.subr.mxu0 0.0
    %1289 = vmatpush1.msra.mxu0 0.0
    %1290 = vmatprep.subr.mxu0 0.0
    %1291 = vmatpush1.msra.mxu0 0.0
    %1292 = vmatprep.subr.mxu0 0.0
    %1293 = vmatpush1.msra.mxu0 0.0
    %1294 = vmatprep.subr.mxu0 0.0
    %1295 = vmatpush1.msra.mxu0 0.0
    %1296 = vmatprep.subr.mxu0 0.0
    %1297 = vmatpush1.msra.mxu0 0.0
    %1298 = vmatprep.subr.mxu0 0.0
    %1299 = vmatpush1.msra.mxu0 0.0
    %1300 = vmatprep.subr.mxu0 0.0
    %1301 = vmatpush1.msra.mxu0 0.0
    %1302 = vmatprep.subr.mxu0 0.0
    %1303 = vmatpush1.msra.mxu0 0.0
    %1304 = vmatprep.subr.mxu0 0.0
    %1305 = vmatpush1.msra.mxu0 0.0
    %1306 = vmatprep.subr.mxu0 0.0
    %1307 = vmatpush1.msra.mxu0 0.0
    %1308 = vmatprep.subr.mxu0 0.0
    %1309 = vmatpush1.msra.mxu0 0.0
    %1310 = vmatprep.subr.mxu0 0.0
    %1311 = vmatpush1.msra.mxu0 0.0
    %1312 = vmatprep.subr.mxu0 0.0
    %1313 = vmatpush1.msra.mxu0 0.0
    %1314 = vmatprep.subr.mxu0 0.0
    %1315 = vmatpush1.msra.mxu0 0.0
    %1316 = vmatprep.subr.mxu0 0.0
    %1317 = vmatpush1.msra.mxu0 0.0
    %1318 = vmatprep.subr.mxu0 0.0
    %1319 = vmatpush1.msra.mxu0 0.0
    %1320 = vmatprep.subr.mxu0 0.0
    %1321 = vmatpush1.msra.mxu0 0.0
    %1322 = vmatprep.subr.mxu0 0.0
    %1323 = vmatpush1.msra.mxu0 0.0
    %1324 = vmatprep.subr.mxu0 0.0
    %1325 = vmatpush1.msra.mxu0 0.0
    %1326 = vmatprep.subr.mxu0 0.0
    %1327 = vmatpush1.msra.mxu0 0.0
    %1328 = vmatprep.subr.mxu0 0.0
    %1329 = vmatpush1.msra.mxu0 0.0
    %1330 = vmatprep.subr.mxu0 0.0
    %1331 = vmatpush1.msra.mxu0 0.0
    %1332 = vmatprep.subr.mxu0 0.0
    %1333 = vmatpush1.msra.mxu0 0.0
    %1334 = vmatprep.subr.mxu0 0.0
    %1335 = vmatpush1.msra.mxu0 0.0
    %1336 = vmatprep.subr.mxu0 0.0
    %1337 = vmatpush1.msra.mxu0 0.0
    %1338 = vmatprep.subr.mxu0 0.0
    %1339 = vmatpush1.msra.mxu0 0.0
    %1340 = vmatprep.subr.mxu0 0.0
    %1341 = vmatpush1.msra.mxu0 0.0
    %1342 = vmatprep.subr.mxu0 0.0
    %1343 = vmatpush1.msra.mxu0 0.0
    %1344 = vmatprep.subr.mxu0 0.0
    %1345 = vmatpush1.msra.mxu0 0.0
    %1346 = vmatprep.subr.mxu0 0.0
    %1347 = vmatpush1.msra.mxu0 0.0
    %1348 = vmatprep.mubr.f32.mxu0 0.0
    %1349 = vmatmul.mubr.f32.gmra.mrb[0].mxu0 %v1282
    %v1350 = vpop.f32.mrb[0].mxu0
    %v1351 = vadd.f32 0.0, %v1350
    %v1352 = vpop.f32.mrb[0].mxu0
    %1353 = vdwg.mxu0
    %v1355 = vsel %vm827, %v914, 0
    %1357 = vmatprep.subr.mxu0 0.0
    %1358 = vmatpush1.msra.mxu0 %v205
    %1359 = vmatprep.subr.mxu0 0.0
    %1360 = vmatpush1.msra.mxu0 0.0
    %1361 = vmatprep.subr.mxu0 0.0
    %1362 = vmatpush1.msra.mxu0 0.0
    %1363 = vmatprep.subr.mxu0 0.0
    %1364 = vmatpush1.msra.mxu0 0.0
    %1365 = vmatprep.subr.mxu0 0.0
    %1366 = vmatpush1.msra.mxu0 0.0
    %1367 = vmatprep.subr.mxu0 0.0
    %1368 = vmatpush1.msra.mxu0 0.0
    %1369 = vmatprep.subr.mxu0 0.0
    %1370 = vmatpush1.msra.mxu0 0.0
    %1371 = vmatprep.subr.mxu0 0.0
    %1372 = vmatpush1.msra.mxu0 0.0
    %1373 = vmatprep.subr.mxu0 0.0
    %1374 = vmatpush1.msra.mxu0 0.0
    %1375 = vmatprep.subr.mxu0 0.0
    %1376 = vmatpush1.msra.mxu0 0.0
    %1377 = vmatprep.subr.mxu0 0.0
    %1378 = vmatpush1.msra.mxu0 0.0
    %1379 = vmatprep.subr.mxu0 0.0
    %1380 = vmatpush1.msra.mxu0 0.0
    %1381 = vmatprep.subr.mxu0 0.0
    %1382 = vmatpush1.msra.mxu0 0.0
    %1383 = vmatprep.subr.mxu0 0.0
    %1384 = vmatpush1.msra.mxu0 0.0
    %1385 = vmatprep.subr.mxu0 0.0
    %1386 = vmatpush1.msra.mxu0 0.0
    %1387 = vmatprep.subr.mxu0 0.0
    %1388 = vmatpush1.msra.mxu0 0.0
    %1389 = vmatprep.subr.mxu0 0.0
    %1390 = vmatpush1.msra.mxu0 0.0
    %1391 = vmatprep.subr.mxu0 0.0
    %1392 = vmatpush1.msra.mxu0 0.0
    %1393 = vmatprep.subr.mxu0 0.0
    %1394 = vmatpush1.msra.mxu0 0.0
    %1395 = vmatprep.subr.mxu0 0.0
    %1396 = vmatpush1.msra.mxu0 0.0
    %1397 = vmatprep.subr.mxu0 0.0
    %1398 = vmatpush1.msra.mxu0 0.0
    %1399 = vmatprep.subr.mxu0 0.0
    %1400 = vmatpush1.msra.mxu0 0.0
    %1401 = vmatprep.subr.mxu0 0.0
    %1402 = vmatpush1.msra.mxu0 0.0
    %1403 = vmatprep.subr.mxu0 0.0
    %1404 = vmatpush1.msra.mxu0 0.0
    %1405 = vmatprep.subr.mxu0 0.0
    %1406 = vmatpush1.msra.mxu0 0.0
    %1407 = vmatprep.subr.mxu0 0.0
    %1408 = vmatpush1.msra.mxu0 0.0
    %1409 = vmatprep.subr.mxu0 0.0
    %1410 = vmatpush1.msra.mxu0 0.0
    %1411 = vmatprep.subr.mxu0 0.0
    %1412 = vmatpush1.msra.mxu0 0.0
    %1413 = vmatprep.subr.mxu0 0.0
    %1414 = vmatpush1.msra.mxu0 0.0
    %1415 = vmatprep.subr.mxu0 0.0
    %1416 = vmatpush1.msra.mxu0 0.0
    %1417 = vmatprep.subr.mxu0 0.0
    %1418 = vmatpush1.msra.mxu0 0.0
    %1419 = vmatprep.subr.mxu0 0.0
    %1420 = vmatpush1.msra.mxu0 0.0
    %1421 = vmatprep.mubr.f32.mxu0 0.0
    %1422 = vmatmul.mubr.f32.gmra.mrb[0].mxu0 %v1355
    %v1423 = vpop.f32.mrb[0].mxu0
    %v1424 = vadd.f32 0.0, %v1423
    %v1425 = vpop.f32.mrb[0].mxu0
    %1426 = vdwg.mxu0
    %v1428 = vsel %vm827, %v915, 0
    %1430 = vmatprep.subr.mxu0 0.0
    %1431 = vmatpush1.msra.mxu0 %v207
    %1432 = vmatprep.subr.mxu0 0.0
    %1433 = vmatpush1.msra.mxu0 0.0
    %1434 = vmatprep.subr.mxu0 0.0
    %1435 = vmatpush1.msra.mxu0 0.0
    %1436 = vmatprep.subr.mxu0 0.0
    %1437 = vmatpush1.msra.mxu0 0.0
    %1438 = vmatprep.subr.mxu0 0.0
    %1439 = vmatpush1.msra.mxu0 0.0
    %1440 = vmatprep.subr.mxu0 0.0
    %1441 = vmatpush1.msra.mxu0 0.0
    %1442 = vmatprep.subr.mxu0 0.0
    %1443 = vmatpush1.msra.mxu0 0.0
    %1444 = vmatprep.subr.mxu0 0.0
    %1445 = vmatpush1.msra.mxu0 0.0
    %1446 = vmatprep.subr.mxu0 0.0
    %1447 = vmatpush1.msra.mxu0 0.0
    %1448 = vmatprep.subr.mxu0 0.0
    %1449 = vmatpush1.msra.mxu0 0.0
    %1450 = vmatprep.subr.mxu0 0.0
    %1451 = vmatpush1.msra.mxu0 0.0
    %1452 = vmatprep.subr.mxu0 0.0
    %1453 = vmatpush1.msra.mxu0 0.0
    %1454 = vmatprep.subr.mxu0 0.0
    %1455 = vmatpush1.msra.mxu0 0.0
    %1456 = vmatprep.subr.mxu0 0.0
    %1457 = vmatpush1.msra.mxu0 0.0
    %1458 = vmatprep.subr.mxu0 0.0
    %1459 = vmatpush1.msra.mxu0 0.0
    %1460 = vmatprep.subr.mxu0 0.0
    %1461 = vmatpush1.msra.mxu0 0.0
    %1462 = vmatprep.subr.mxu0 0.0
    %1463 = vmatpush1.msra.mxu0 0.0
    %1464 = vmatprep.subr.mxu0 0.0
    %1465 = vmatpush1.msra.mxu0 0.0
    %1466 = vmatprep.subr.mxu0 0.0
    %1467 = vmatpush1.msra.mxu0 0.0
    %1468 = vmatprep.subr.mxu0 0.0
    %1469 = vmatpush1.msra.mxu0 0.0
    %1470 = vmatprep.subr.mxu0 0.0
    %1471 = vmatpush1.msra.mxu0 0.0
    %1472 = vmatprep.subr.mxu0 0.0
    %1473 = vmatpush1.msra.mxu0 0.0
    %1474 = vmatprep.subr.mxu0 0.0
    %1475 = vmatpush1.msra.mxu0 0.0
    %1476 = vmatprep.subr.mxu0 0.0
    %1477 = vmatpush1.msra.mxu0 0.0
    %1478 = vmatprep.subr.mxu0 0.0
    %1479 = vmatpush1.msra.mxu0 0.0
    %1480 = vmatprep.subr.mxu0 0.0
    %1481 = vmatpush1.msra.mxu0 0.0
    %1482 = vmatprep.subr.mxu0 0.0
    %1483 = vmatpush1.msra.mxu0 0.0
    %1484 = vmatprep.subr.mxu0 0.0
    %1485 = vmatpush1.msra.mxu0 0.0
    %1486 = vmatprep.subr.mxu0 0.0
    %1487 = vmatpush1.msra.mxu0 0.0
    %1488 = vmatprep.subr.mxu0 0.0
    %1489 = vmatpush1.msra.mxu0 0.0
    %1490 = vmatprep.subr.mxu0 0.0
    %1491 = vmatpush1.msra.mxu0 0.0
    %1492 = vmatprep.subr.mxu0 0.0
    %1493 = vmatpush1.msra.mxu0 0.0
    %1494 = vmatprep.mubr.f32.mxu0 0.0
    %1495 = vmatmul.mubr.f32.gmra.mrb[0].mxu0 %v1428
    %v1496 = vpop.f32.mrb[0].mxu0
    %v1497 = vadd.f32 0.0, %v1496
    %v1498 = vpop.f32.mrb[0].mxu0
    %1499 = vdwg.mxu0
    %1502 = vrot.lane.b32.xlu0 %v1132, 16
    %v1503 = vpop.permute.xlu0 %1502
    %1504 = vrot.lane.b32.xlu0 %v1205, 16
    %v1505 = vpop.permute.xlu0 %1504
    %1510 = vrot.lane.b32.xlu0 %v1278, 32
    %v1511 = vpop.permute.xlu0 %1510
    %1512 = vrot.lane.b32.xlu0 %v1351, 32
    %v1513 = vpop.permute.xlu0 %1512
    %1518 = vrot.lane.b32.xlu0 %v1424, 48
    %v1519 = vpop.permute.xlu0 %1518
    %1520 = vrot.lane.b32.xlu0 %v1497, 48
    %v1521 = vpop.permute.xlu0 %1520
    %v1524 = vsel %vm212, %v986, %v1503
    %v1525 = vsel %vm212, %v1059, %v1505
    %vm1526 = vcmask 261120
    %v1527 = vsel %vm1526, %v1524, %v1511
    %v1528 = vsel %vm1526, %v1525, %v1513
    %vm1529 = vcmask 392192
    %v1530 = vsel %vm1529, %v1527, %v1519
    %v1531 = vsel %vm1529, %v1528, %v1521
    %v1532 = vld [vmem:[#allocation7] sm:$0xff]
    %v1533 = vld [vmem:[#allocation7 + $0x8] sm:$0xff]
    %v1534 = vld [vmem:[#allocation7 + $0x10] sm:$0xff]
    %v1535 = vld [vmem:[#allocation7 + $0x18] sm:$0xff]
    %v1536 = vld [vmem:[#allocation7 + $0x20] sm:$0xff]
    %v1537 = vld [vmem:[#allocation7 + $0x28] sm:$0xff]
    %v1538 = vld [vmem:[#allocation7 + $0x30] sm:$0xff]
    %v1539 = vld [vmem:[#allocation7 + $0x38] sm:$0xff]
    %v1540 = vld [vmem:[%s4] sm:$0x1]
    %v1542 = vlaneseq
    %v1543 = vshrl.u32 %v1542, 7
    %v1544 = vsub.s32 0, %v1543
    %v1545 = vrot.slane %v1540, %v1544
    %v1548 = vsel %vm92, %v1530, 0
    %v1551 = vsel %vm92, %v1531, 0
    %1553 = vmatprep.subr.mxu0 0.0
    %1554 = vmatpush1.msra.mxu0 %v1532
    %1555 = vmatprep.subr.mxu0 0.0
    %1556 = vmatpush1.msra.mxu0 %v1533
    %1557 = vmatprep.subr.mxu0 0.0
    %1558 = vmatpush1.msra.mxu0 %v1534
    %1559 = vmatprep.subr.mxu0 0.0
    %1560 = vmatpush1.msra.mxu0 %v1535
    %1561 = vmatprep.subr.mxu0 0.0
    %1562 = vmatpush1.msra.mxu0 %v1536
    %1563 = vmatprep.subr.mxu0 0.0
    %1564 = vmatpush1.msra.mxu0 %v1537
    %1565 = vmatprep.subr.mxu0 0.0
    %1566 = vmatpush1.msra.mxu0 %v1538
    %1567 = vmatprep.subr.mxu0 0.0
    %1568 = vmatpush1.msra.mxu0 %v1539
    %1569 = vmatprep.subr.mxu0 0.0
    %1570 = vmatpush1.msra.mxu0 0.0
    %1571 = vmatprep.subr.mxu0 0.0
    %1572 = vmatpush1.msra.mxu0 0.0
    %1573 = vmatprep.subr.mxu0 0.0
    %1574 = vmatpush1.msra.mxu0 0.0
    %1575 = vmatprep.subr.mxu0 0.0
    %1576 = vmatpush1.msra.mxu0 0.0
    %1577 = vmatprep.subr.mxu0 0.0
    %1578 = vmatpush1.msra.mxu0 0.0
    %1579 = vmatprep.subr.mxu0 0.0
    %1580 = vmatpush1.msra.mxu0 0.0
    %1581 = vmatprep.subr.mxu0 0.0
    %1582 = vmatpush1.msra.mxu0 0.0
    %1583 = vmatprep.subr.mxu0 0.0
    %1584 = vmatpush1.msra.mxu0 0.0
    %1585 = vmatprep.subr.mxu0 0.0
    %1586 = vmatpush1.msra.mxu0 0.0
    %1587 = vmatprep.subr.mxu0 0.0
    %1588 = vmatpush1.msra.mxu0 0.0
    %1589 = vmatprep.subr.mxu0 0.0
    %1590 = vmatpush1.msra.mxu0 0.0
    %1591 = vmatprep.subr.mxu0 0.0
    %1592 = vmatpush1.msra.mxu0 0.0
    %1593 = vmatprep.subr.mxu0 0.0
    %1594 = vmatpush1.msra.mxu0 0.0
    %1595 = vmatprep.subr.mxu0 0.0
    %1596 = vmatpush1.msra.mxu0 0.0
    %1597 = vmatprep.subr.mxu0 0.0
    %1598 = vmatpush1.msra.mxu0 0.0
    %1599 = vmatprep.subr.mxu0 0.0
    %1600 = vmatpush1.msra.mxu0 0.0
    %1601 = vmatprep.subr.mxu0 0.0
    %1602 = vmatpush1.msra.mxu0 0.0
    %1603 = vmatprep.subr.mxu0 0.0
    %1604 = vmatpush1.msra.mxu0 0.0
    %1605 = vmatprep.subr.mxu0 0.0
    %1606 = vmatpush1.msra.mxu0 0.0
    %1607 = vmatprep.subr.mxu0 0.0
    %1608 = vmatpush1.msra.mxu0 0.0
    %1609 = vmatprep.subr.mxu0 0.0
    %1610 = vmatpush1.msra.mxu0 0.0
    %1611 = vmatprep.subr.mxu0 0.0
    %1612 = vmatpush1.msra.mxu0 0.0
    %1613 = vmatprep.subr.mxu0 0.0
    %1614 = vmatpush1.msra.mxu0 0.0
    %1615 = vmatprep.subr.mxu0 0.0
    %1616 = vmatpush1.msra.mxu0 0.0
    %1617 = vmatprep.mubr.f32.mxu0 0.0
    %1618 = vmatmul.mubr.f32.gmra.mrb[0].mxu0 %v1548
    %v1619 = vpop.f32.mrb[0].mxu0
    %v1620 = vadd.f32 %v1545, %v1619
    %v1621 = vpop.f32.mrb[0].mxu0
    %1622 = vmatprep.mubr.f32.mxu0 0.0
    %1623 = vmatmul.mubr.f32.gmra.mrb[0].mxu0 %v1551
    %v1624 = vpop.f32.mrb[0].mxu0
    %v1625 = vadd.f32 %v1545, %v1624
    %v1626 = vpop.f32.mrb[0].mxu0
    %1627 = vdwg.mxu0
    %1628 = vst.msk [vmem:[#allocation8] sm:$0xff] %vm92, %v1620
    %1629 = vst.msk [vmem:[#allocation8 + $0x8] sm:$0xff] %vm92, %v1625
    // Predicated region
    $region34: #{tpu_custom_call.1} parent=1 // pred_check
      _
    $region35: #{tpu_custom_call.1} parent=1 // pred_check_branch
      %1631 = sbr.rel (0) target = $region37
    $region36: #{tpu_custom_call.1} parent=1 // pred_region
      %s1633 = ssub.s32 256, 256
      %1634 = vsyncadd [#allocation4], %s1633
      %s1635 = sshll.u32 [#allocation8], 4
      %s1636 = int_to_ptr.vmem [resolvable:$true] %s1635
      %1641 = dma.vmem_to_hbm [thread:$0]  %s1636, 256, %s5, [#allocation4], 128, 128, 8
    $region37: #{tpu_custom_call.1} parent=1 // pred_fallthru
      _
    // Predicated region
    $region38: #{tpu_custom_call.1} parent=1 // pred_check
      _
    $region39: #{tpu_custom_call.1} parent=1 // pred_check_branch
      %1643 = sbr.rel (0) target = $region41
    $region40: #{tpu_custom_call.1} parent=1 // pred_region
      %1644 = dma.done [#allocation4], 256
    $region41: #{tpu_custom_call.1} parent=1 // pred_fallthru
      _
    %1645 = vsyncpa [#allocation3], 1
    %1646 = vsyncpa [#allocation6], 1
    %1647 = vsyncpa [#allocation4], 1

</llo_original>
